<compile_context>
chip_gen: v7x
topology: tpu7x:2x2x1
jax: 0.10.0
libtpu: 0.0.40
codegen_flags: <defaults>
</compile_context>

<pallas_src>
from functools import partial

import jax
import jax.numpy as jnp
from jax.experimental import pallas as pl
from jax.experimental.pallas import tpu as pltpu


def _personalized_embedding_kernel(
    user_ref, item_ref, ctx_ref,        # (b_tile,1), (b_tile,1), (b_tile,max(C,1)) int32
    theta_ref, beta_ref, rho_ref,       # full tables, VMEM-resident
    out_ref,                            # (b_tile, 1) f32 output block
    *, n_ctx,
):
    f32 = jnp.float32

    # Tables are fetched once (constant index_map) and reused every grid step.
    theta = theta_ref[...].astype(f32)          # (n_users, F)
    beta = beta_ref[...].astype(f32)            # (n_items, F)
    rho = rho_ref[...].astype(f32)              # (n_items, F)

    user = user_ref[...]                        # (b_tile, 1) int32
    item = item_ref[...]                        # (b_tile, 1) int32
    ctx = ctx_ref[...]                          # (b_tile, max(n_ctx, 1)) int32

    b_tile = user.shape[0]
    n_users = theta.shape[0]
    n_items = beta.shape[0]

    u_iota = jax.lax.broadcasted_iota(jnp.int32, (b_tile, n_users), 1)
    i_iota = jax.lax.broadcasted_iota(jnp.int32, (b_tile, n_items), 1)

    onehot_u = (user == u_iota).astype(f32)     # (b_tile, n_users)
    onehot_i = (item == i_iota).astype(f32)     # (b_tile, n_items)

    hi = jax.lax.Precision.HIGHEST
    theta_u = jnp.dot(onehot_u, theta, preferred_element_type=f32, precision=hi)
    beta_i = jnp.dot(onehot_i, beta, preferred_element_type=f32, precision=hi)

    if n_ctx > 0:
        # Multi-hot count matrix: rho[contexts].sum(1) == counts @ rho.
        counts = (ctx[:, 0:1] == i_iota).astype(f32)
        for c in range(1, n_ctx):               # static, small C
            counts = counts + (ctx[:, c:c + 1] == i_iota).astype(f32)
        rho_ui = jnp.dot(counts, rho, preferred_element_type=f32, precision=hi)
        feat = theta_u + rho_ui
    else:
        feat = theta_u

    # (theta_u*beta_i).sum + (beta_i*rho_ui).sum == (beta_i*(theta_u+rho_ui)).sum
    logits = jnp.sum(beta_i * feat, axis=1, keepdims=True)      # (b_tile, 1)
    out_ref[...] = jax.nn.sigmoid(logits).astype(out_ref.dtype)


@partial(jax.jit, static_argnames=("b_tile",))
def personalized_embedding_forward(theta, beta, rho, user, item, contexts, *, b_tile=256):
    """theta: (n_users, F); beta, rho: (n_items, F); user, item: (B,) int;
    contexts: (B, C) int  ->  (B,) float32 predictions."""
    n_users, n_factors = theta.shape
    n_items = beta.shape[0]
    batch = user.shape[0]
    n_ctx = contexts.shape[1]

    num_tiles = (batch + b_tile - 1) // b_tile
    b_pad = num_tiles * b_tile
    pad = b_pad - batch

    # Pad index arrays with 0 (a valid row); padded outputs are sliced away below.
    user2d = jnp.pad(user.astype(jnp.int32), (0, pad)).reshape(b_pad, 1)
    item2d = jnp.pad(item.astype(jnp.int32), (0, pad)).reshape(b_pad, 1)
    if n_ctx == 0:
        ctx2d = jnp.zeros((b_pad, 1), jnp.int32)   # dummy, unused in kernel
        ctx_cols = 1
    else:
        ctx2d = jnp.pad(contexts.astype(jnp.int32), ((0, pad), (0, 0)))
        ctx_cols = n_ctx

    kernel = partial(_personalized_embedding_kernel, n_ctx=n_ctx)

    grid_spec = pltpu.PrefetchScalarGridSpec(
        num_scalar_prefetch=0,
        grid=(num_tiles,),
        in_specs=[
            pl.BlockSpec((b_tile, 1), lambda t: (t, 0)),          # user indices
            pl.BlockSpec((b_tile, 1), lambda t: (t, 0)),          # item indices
            pl.BlockSpec((b_tile, ctx_cols), lambda t: (t, 0)),   # context indices
            # Tables stay resident in VMEM: full-array block, constant index_map.
            pl.BlockSpec((n_users, n_factors), lambda t: (0, 0)),
            pl.BlockSpec((n_items, n_factors), lambda t: (0, 0)),
            pl.BlockSpec((n_items, n_factors), lambda t: (0, 0)),
        ],
        out_specs=pl.BlockSpec((b_tile, 1), lambda t: (t, 0)),
    )

    out = pl.pallas_call(
        kernel,
        out_shape=jax.ShapeDtypeStruct((b_pad, 1), jnp.float32),
        grid_spec=grid_spec,
        compiler_params=pltpu.CompilerParams(
            dimension_semantics=("parallel",),
            # 32 MiB: raises the 16 MiB v5e default, within v6e/v7x budgets for the
            # table sizes this resident-gather path targets.
            vmem_limit_bytes=32 * 1024 * 1024,
        ),
    )(user2d, item2d, ctx2d, theta, beta, rho)

    return out.reshape(b_pad)[:batch]


def _reference_forward(theta, beta, rho, user, item, contexts):
    theta_u = theta[user]
    beta_i = beta[item]
    rho_ui = rho[contexts].sum(axis=1)
    uip = (theta_u * beta_i).sum(axis=1)
    icp = (beta_i * rho_ui).sum(axis=1)
    return jax.nn.sigmoid(uip + icp)


if __name__ == "__main__":
    n_users, n_items, n_factors = 32, 64, 40
    batch, n_ctx = 40, 4
    b_tile = 16   # padded batch 48 -> grid of 3 tiles (exercises tiling + padding)

    key = jax.random.PRNGKey(0)
    k_theta, k_beta, k_rho, k_u, k_i, k_c = jax.random.split(key, 6)

    # nn.Embedding default init: N(0, 1)
    theta = jax.random.normal(k_theta, (n_users, n_factors), dtype=jnp.float32)
    beta = jax.random.normal(k_beta, (n_items, n_factors), dtype=jnp.float32)
    rho = jax.random.normal(k_rho, (n_items, n_factors), dtype=jnp.float32)

    user = jax.random.randint(k_u, (batch,), 0, n_users, dtype=jnp.int32)
    item = jax.random.randint(k_i, (batch,), 0, n_items, dtype=jnp.int32)
    contexts = jax.random.randint(k_c, (batch, n_ctx), 0, n_items, dtype=jnp.int32)

    preds = personalized_embedding_forward(
        theta, beta, rho, user, item, contexts, b_tile=b_tile
    )
    preds = jax.block_until_ready(preds)

    ref = _reference_forward(theta, beta, rho, user, item, contexts)
    assert preds.shape == (batch,)
    assert jnp.allclose(preds, ref, atol=1e-4, rtol=1e-4), float(
        jnp.max(jnp.abs(preds - ref))
    )

    print("KERNEL_OK")
</pallas_src>

<mosaic_0001>
module attributes {stable_mosaic.version = 11 : i64} {
  func.func @_personalized_embedding_kernel(%arg0: i32, %arg1: memref<16x1xi32, #tpu.memory_space<vmem>>, %arg2: memref<16x1xi32, #tpu.memory_space<vmem>>, %arg3: memref<16x4xi32, #tpu.memory_space<vmem>>, %arg4: memref<32x40xf32, #tpu.memory_space<vmem>>, %arg5: memref<64x40xf32, #tpu.memory_space<vmem>>, %arg6: memref<64x40xf32, #tpu.memory_space<vmem>>, %arg7: memref<16x1xf32, #tpu.memory_space<vmem>>) attributes {dimension_semantics = [#tpu.dimension_semantics<parallel>], iteration_bounds = array<i64: 3>, scalar_prefetch = 0 : i64, scratch_operands = 0 : i64, tpu.core_type = #tpu.core_type<tc>, window_params = [{transform_indices = @transform_0, window_bounds = array<i64: 16, 1>}, {transform_indices = @transform_1, window_bounds = array<i64: 16, 1>}, {transform_indices = @transform_2, window_bounds = array<i64: 16, 4>}, {pipeline_mode = #tpu.pipeline_mode<synchronous>, transform_indices = @transform_3, window_bounds = array<i64: 32, 40>}, {pipeline_mode = #tpu.pipeline_mode<synchronous>, transform_indices = @transform_4, window_bounds = array<i64: 64, 40>}, {pipeline_mode = #tpu.pipeline_mode<synchronous>, transform_indices = @transform_5, window_bounds = array<i64: 64, 40>}, {transform_indices = @transform_6, window_bounds = array<i64: 16, 1>}]} {
    %c0 = arith.constant 0 : index
    %c0_0 = arith.constant 0 : index
    %0 = vector.load %arg4[%c0, %c0_0] : memref<32x40xf32, #tpu.memory_space<vmem>>, vector<32x40xf32>
    %c0_1 = arith.constant 0 : index
    %c0_2 = arith.constant 0 : index
    %1 = vector.load %arg5[%c0_1, %c0_2] : memref<64x40xf32, #tpu.memory_space<vmem>>, vector<64x40xf32>
    %c0_3 = arith.constant 0 : index
    %c0_4 = arith.constant 0 : index
    %2 = vector.load %arg6[%c0_3, %c0_4] : memref<64x40xf32, #tpu.memory_space<vmem>>, vector<64x40xf32>
    %c0_5 = arith.constant 0 : index
    %c0_6 = arith.constant 0 : index
    %3 = vector.load %arg1[%c0_5, %c0_6] : memref<16x1xi32, #tpu.memory_space<vmem>>, vector<16x1xi32>
    %c0_7 = arith.constant 0 : index
    %c0_8 = arith.constant 0 : index
    %4 = vector.load %arg2[%c0_7, %c0_8] : memref<16x1xi32, #tpu.memory_space<vmem>>, vector<16x1xi32>
    %c0_9 = arith.constant 0 : index
    %c0_10 = arith.constant 0 : index
    %5 = vector.load %arg3[%c0_9, %c0_10] : memref<16x4xi32, #tpu.memory_space<vmem>>, vector<16x4xi32>
    %6 = tpu.iota {dimensions = array<i32: 1>} : vector<16x32xi32>
    %7 = tpu.iota {dimensions = array<i32: 1>} : vector<16x64xi32>
    %8 = vector.broadcast %3 : vector<16x1xi32> to vector<16x32xi32>
    %9 = arith.cmpi eq, %8, %6 : vector<16x32xi32>
    %10 = arith.extui %9 : vector<16x32xi1> to vector<16x32xi32>
    %11 = arith.sitofp %10 : vector<16x32xi32> to vector<16x32xf32>
    %12 = vector.broadcast %4 : vector<16x1xi32> to vector<16x64xi32>
    %13 = arith.cmpi eq, %12, %7 : vector<16x64xi32>
    %14 = arith.extui %13 : vector<16x64xi1> to vector<16x64xi32>
    %15 = arith.sitofp %14 : vector<16x64xi32> to vector<16x64xf32>
    %cst = arith.constant dense<0.000000e+00> : vector<16x40xf32>
    %16 = tpu.matmul %11, %0, %cst {dimension_numbers = #tpu.dot_dimension_numbers<[1], [0], [0], [1], [0, 0, 1, 1], [], []>, precision = #tpu.contract_precision<fp32>} : vector<16x32xf32>, vector<32x40xf32>, vector<16x40xf32> -> vector<16x40xf32>
    %cst_11 = arith.constant dense<0.000000e+00> : vector<16x40xf32>
    %17 = tpu.matmul %15, %1, %cst_11 {dimension_numbers = #tpu.dot_dimension_numbers<[1], [0], [0], [1], [0, 0, 1, 1], [], []>, precision = #tpu.contract_precision<fp32>} : vector<16x64xf32>, vector<64x40xf32>, vector<16x40xf32> -> vector<16x40xf32>
    %18 = vector.extract_strided_slice %5 {offsets = [0, 0], sizes = [16, 1], strides = [1, 1]} : vector<16x4xi32> to vector<16x1xi32>
    %19 = vector.broadcast %18 : vector<16x1xi32> to vector<16x64xi32>
    %20 = arith.cmpi eq, %19, %7 : vector<16x64xi32>
    %21 = arith.extui %20 : vector<16x64xi1> to vector<16x64xi32>
    %22 = arith.sitofp %21 : vector<16x64xi32> to vector<16x64xf32>
    %23 = vector.extract_strided_slice %5 {offsets = [0, 1], sizes = [16, 1], strides = [1, 1]} : vector<16x4xi32> to vector<16x1xi32>
    %24 = vector.broadcast %23 : vector<16x1xi32> to vector<16x64xi32>
    %25 = arith.cmpi eq, %24, %7 : vector<16x64xi32>
    %26 = arith.extui %25 : vector<16x64xi1> to vector<16x64xi32>
    %27 = arith.sitofp %26 : vector<16x64xi32> to vector<16x64xf32>
    %28 = arith.addf %22, %27 : vector<16x64xf32>
    %29 = vector.extract_strided_slice %5 {offsets = [0, 2], sizes = [16, 1], strides = [1, 1]} : vector<16x4xi32> to vector<16x1xi32>
    %30 = vector.broadcast %29 : vector<16x1xi32> to vector<16x64xi32>
    %31 = arith.cmpi eq, %30, %7 : vector<16x64xi32>
    %32 = arith.extui %31 : vector<16x64xi1> to vector<16x64xi32>
    %33 = arith.sitofp %32 : vector<16x64xi32> to vector<16x64xf32>
    %34 = arith.addf %28, %33 : vector<16x64xf32>
    %35 = vector.extract_strided_slice %5 {offsets = [0, 3], sizes = [16, 1], strides = [1, 1]} : vector<16x4xi32> to vector<16x1xi32>
    %36 = vector.broadcast %35 : vector<16x1xi32> to vector<16x64xi32>
    %37 = arith.cmpi eq, %36, %7 : vector<16x64xi32>
    %38 = arith.extui %37 : vector<16x64xi1> to vector<16x64xi32>
    %39 = arith.sitofp %38 : vector<16x64xi32> to vector<16x64xf32>
    %40 = arith.addf %34, %39 : vector<16x64xf32>
    %cst_12 = arith.constant dense<0.000000e+00> : vector<16x40xf32>
    %41 = tpu.matmul %40, %2, %cst_12 {dimension_numbers = #tpu.dot_dimension_numbers<[1], [0], [0], [1], [0, 0, 1, 1], [], []>, precision = #tpu.contract_precision<fp32>} : vector<16x64xf32>, vector<64x40xf32>, vector<16x40xf32> -> vector<16x40xf32>
    %42 = arith.addf %16, %41 : vector<16x40xf32>
    %43 = arith.mulf %17, %42 : vector<16x40xf32>
    %cst_13 = arith.constant dense<0.000000e+00> : vector<16xf32>
    %44 = vector.multi_reduction <add>, %43, %cst_13 [1] : vector<16x40xf32> to vector<16xf32>
    %45 = vector.shape_cast %44 : vector<16xf32> to vector<16x1xf32>
    %46 = arith.negf %45 : vector<16x1xf32>
    %47 = math.exp %46 : vector<16x1xf32>
    %cst_14 = arith.constant 1.000000e+00 : f32
    %48 = vector.broadcast %cst_14 : f32 to vector<16x1xf32>
    %49 = arith.addf %48, %47 : vector<16x1xf32>
    %50 = arith.divf %48, %49 : vector<16x1xf32>
    %c0_15 = arith.constant 0 : index
    %c0_16 = arith.constant 0 : index
    %51 = vector.load %arg7[%c0_15, %c0_16] : memref<16x1xf32, #tpu.memory_space<vmem>>, vector<16x1xf32>
    tpu.vector_store %arg7[%c0_15, %c0_16], %50 {strides = array<i32>} : memref<16x1xf32, #tpu.memory_space<vmem>>, vector<16x1xf32>,
    return
  }
  func.func @transform_0(%arg0: i32) -> (i32, i32) {
    %c0_i32 = arith.constant 0 : i32
    %c0_i32_0 = arith.constant 0 : i32
    return %arg0, %c0_i32 : i32, i32
  }
  func.func @transform_1(%arg0: i32) -> (i32, i32) {
    %c0_i32 = arith.constant 0 : i32
    %c0_i32_0 = arith.constant 0 : i32
    return %arg0, %c0_i32 : i32, i32
  }
  func.func @transform_2(%arg0: i32) -> (i32, i32) {
    %c0_i32 = arith.constant 0 : i32
    %c0_i32_0 = arith.constant 0 : i32
    return %arg0, %c0_i32 : i32, i32
  }
  func.func @transform_3(%arg0: i32) -> (i32, i32) {
    %c0_i32 = arith.constant 0 : i32
    %c0_i32_0 = arith.constant 0 : i32
    %c0_i32_1 = arith.constant 0 : i32
    return %c0_i32, %c0_i32_0 : i32, i32
  }
  func.func @transform_4(%arg0: i32) -> (i32, i32) {
    %c0_i32 = arith.constant 0 : i32
    %c0_i32_0 = arith.constant 0 : i32
    %c0_i32_1 = arith.constant 0 : i32
    return %c0_i32, %c0_i32_0 : i32, i32
  }
  func.func @transform_5(%arg0: i32) -> (i32, i32) {
    %c0_i32 = arith.constant 0 : i32
    %c0_i32_0 = arith.constant 0 : i32
    %c0_i32_1 = arith.constant 0 : i32
    return %c0_i32, %c0_i32_0 : i32, i32
  }
  func.func @transform_6(%arg0: i32) -> (i32, i32) {
    %c0_i32 = arith.constant 0 : i32
    %c0_i32_0 = arith.constant 0 : i32
    return %arg0, %c0_i32 : i32, i32
  }
}

</mosaic_0001>

<llo_original>
// kernel: personalized_embedding_forward.1
$region0: #{personalized_embedding_forward.1}
  #allocation0 [shape = 'u32[]', space=smem, size = 0x4, offset = 0x4, fixed_abs, tag = 'smem constant byte address 0x4 - core index']
  #allocation1 [shape = 'u32[144,128]{1,0:T(1,128)}', space=vmem, size = 0x12000, scoped, tag = 'internal scratch']
  %s0 = inlined_call_operand.vmem [shape: s32[48,1], index: 0, kind: input, shape index: {}]
  %s1 = inlined_call_operand.vmem [shape: s32[48,1], index: 1, kind: input, shape index: {}]
  %s2 = inlined_call_operand.vmem [shape: s32[48,4], index: 2, kind: input, shape index: {}]
  %s3 = inlined_call_operand.vmem [shape: f32[32,40], index: 3, kind: input, shape index: {}]
  %s4 = inlined_call_operand.vmem [shape: f32[64,40], index: 4, kind: input, shape index: {}]
  %s5 = inlined_call_operand.vmem [shape: f32[64,40], index: 5, kind: input, shape index: {}]
  %s6 = inlined_call_operand.vmem [shape: f32[48,1], index: 6, kind: output, shape index: {}]
  %s7 = sld [smem:[#allocation0]]
  $region57: #{personalized_embedding_forward.1} parent=0
    _
  %s9 = ssub.s32 1, %s7
  %s10 = scalar_select 0, %s9, %s7
  loop: start=0, step=1, limit=5
  $region2: #{personalized_embedding_forward.1} parent=0 // loop_pre_header
    _
  $region3: #{personalized_embedding_forward.1} parent=0 // loop_header
    %s12 = sphi 0, %s16
    %p13 = scmp.ge.s32.totalorder %s12, 5
    %s22 = sphi 0, %s24
    %s25 = sphi 0, %s22
    %s26 = sphi 0, %s25
    %s42 = sphi 0, %s26
    %s48 = sphi 0, %s50
    %s51 = sphi 0, %s48
    %s52 = sphi 0, %s51
    %s68 = sphi 0, %s52
    %s74 = sphi 0, %s76
    %s77 = sphi 0, %s74
    %s78 = sphi 0, %s77
    %s94 = sphi 0, %s78
    %s98 = sphi 0, %s98
    %s100 = sphi 0, %s98
    %s101 = sphi 0, %s100
    %s115 = sphi 0, %s101
    %s119 = sphi 0, %s119
    %s121 = sphi 0, %s119
    %s122 = sphi 0, %s121
    %s136 = sphi 0, %s122
    %s140 = sphi 0, %s140
    %s142 = sphi 0, %s140
    %s143 = sphi 0, %s142
    %s157 = sphi 0, %s143
    %s163 = sphi 0, %s165
    %s166 = sphi 0, %s163
    %s167 = sphi 0, %s166
    %s183 = sphi 0, %s167
  $region4: #{personalized_embedding_forward.1} parent=0 // loop_header_branch
    %15 = sbr.rel (%p13) target = $region8
  $region5: #{personalized_embedding_forward.1} parent=0 // loop_body
    %s17 = ssub.s32 %s12, 1
    %s18 = ssub.s32 %s12, 2
    %s19 = sadd.s32 %s12, 1
    %s20 = ssub.s32 %s12, %s19
    %p21 = scmp.eq.s32.totalorder %s20, 0
    %s23 = sadd.s32 %s22, 1
    %s24 = scalar_select %p21, %s22, %s23
    %p27 = pneg %p21
    %p28 = scmp.eq.s32.totalorder %s12, 2
    %p29 = por %p27, %p28
    %p30 = scmp.ne.s32.totalorder %s22, %s25
    %p31 = scmp.eq.s32.totalorder %s12, 0
    %p32 = por %p30, %p31
    %p33 = scmp.ne.s32.totalorder %s22, %s25
    %p34 = scmp.eq.s32.totalorder %s17, 2
    %p35 = por %p33, %p34
    %p36 = scmp.ne.s32.totalorder %s25, %s26
    %p37 = scmp.eq.s32.totalorder %s17, 0
    %p38 = por %p36, %p37
    %p39 = scmp.ne.s32.totalorder %s25, %s26
    %p40 = scmp.eq.s32.totalorder %s18, 2
    %p41 = por %p39, %p40
    %p43 = scmp.ne.s32.totalorder %s26, %s42
    %p44 = scmp.eq.s32.totalorder %s18, 0
    %p45 = por %p43, %p44
    %s46 = ssub.s32 %s12, %s19
    %p47 = scmp.eq.s32.totalorder %s46, 0
    %s49 = sadd.s32 %s48, 1
    %s50 = scalar_select %p47, %s48, %s49
    %p53 = pneg %p47
    %p54 = scmp.eq.s32.totalorder %s12, 2
    %p55 = por %p53, %p54
    %p56 = scmp.ne.s32.totalorder %s48, %s51
    %p57 = scmp.eq.s32.totalorder %s12, 0
    %p58 = por %p56, %p57
    %p59 = scmp.ne.s32.totalorder %s48, %s51
    %p60 = scmp.eq.s32.totalorder %s17, 2
    %p61 = por %p59, %p60
    %p62 = scmp.ne.s32.totalorder %s51, %s52
    %p63 = scmp.eq.s32.totalorder %s17, 0
    %p64 = por %p62, %p63
    %p65 = scmp.ne.s32.totalorder %s51, %s52
    %p66 = scmp.eq.s32.totalorder %s18, 2
    %p67 = por %p65, %p66
    %p69 = scmp.ne.s32.totalorder %s52, %s68
    %p70 = scmp.eq.s32.totalorder %s18, 0
    %p71 = por %p69, %p70
    %s72 = ssub.s32 %s12, %s19
    %p73 = scmp.eq.s32.totalorder %s72, 0
    %s75 = sadd.s32 %s74, 1
    %s76 = scalar_select %p73, %s74, %s75
    %p79 = pneg %p73
    %p80 = scmp.eq.s32.totalorder %s12, 2
    %p81 = por %p79, %p80
    %p82 = scmp.ne.s32.totalorder %s74, %s77
    %p83 = scmp.eq.s32.totalorder %s12, 0
    %p84 = por %p82, %p83
    %p85 = scmp.ne.s32.totalorder %s74, %s77
    %p86 = scmp.eq.s32.totalorder %s17, 2
    %p87 = por %p85, %p86
    %p88 = scmp.ne.s32.totalorder %s77, %s78
    %p89 = scmp.eq.s32.totalorder %s17, 0
    %p90 = por %p88, %p89
    %p91 = scmp.ne.s32.totalorder %s77, %s78
    %p92 = scmp.eq.s32.totalorder %s18, 2
    %p93 = por %p91, %p92
    %p95 = scmp.ne.s32.totalorder %s78, %s94
    %p96 = scmp.eq.s32.totalorder %s18, 0
    %p97 = por %p95, %p96
    %s99 = sadd.s32 %s98, 1
    %p102 = scmp.eq.s32.totalorder %s12, 2
    %p103 = scmp.ne.s32.totalorder %s98, %s100
    %p104 = scmp.eq.s32.totalorder %s12, 0
    %p105 = por %p103, %p104
    %p106 = scmp.ne.s32.totalorder %s98, %s100
    %p107 = scmp.eq.s32.totalorder %s17, 2
    %p108 = por %p106, %p107
    %p109 = scmp.ne.s32.totalorder %s100, %s101
    %p110 = scmp.eq.s32.totalorder %s17, 0
    %p111 = por %p109, %p110
    %p112 = scmp.ne.s32.totalorder %s100, %s101
    %p113 = scmp.eq.s32.totalorder %s18, 2
    %p114 = por %p112, %p113
    %p116 = scmp.ne.s32.totalorder %s101, %s115
    %p117 = scmp.eq.s32.totalorder %s18, 0
    %p118 = por %p116, %p117
    %s120 = sadd.s32 %s119, 1
    %p123 = scmp.eq.s32.totalorder %s12, 2
    %p124 = scmp.ne.s32.totalorder %s119, %s121
    %p125 = scmp.eq.s32.totalorder %s12, 0
    %p126 = por %p124, %p125
    %p127 = scmp.ne.s32.totalorder %s119, %s121
    %p128 = scmp.eq.s32.totalorder %s17, 2
    %p129 = por %p127, %p128
    %p130 = scmp.ne.s32.totalorder %s121, %s122
    %p131 = scmp.eq.s32.totalorder %s17, 0
    %p132 = por %p130, %p131
    %p133 = scmp.ne.s32.totalorder %s121, %s122
    %p134 = scmp.eq.s32.totalorder %s18, 2
    %p135 = por %p133, %p134
    %p137 = scmp.ne.s32.totalorder %s122, %s136
    %p138 = scmp.eq.s32.totalorder %s18, 0
    %p139 = por %p137, %p138
    %s141 = sadd.s32 %s140, 1
    %p144 = scmp.eq.s32.totalorder %s12, 2
    %p145 = scmp.ne.s32.totalorder %s140, %s142
    %p146 = scmp.eq.s32.totalorder %s12, 0
    %p147 = por %p145, %p146
    %p148 = scmp.ne.s32.totalorder %s140, %s142
    %p149 = scmp.eq.s32.totalorder %s17, 2
    %p150 = por %p148, %p149
    %p151 = scmp.ne.s32.totalorder %s142, %s143
    %p152 = scmp.eq.s32.totalorder %s17, 0
    %p153 = por %p151, %p152
    %p154 = scmp.ne.s32.totalorder %s142, %s143
    %p155 = scmp.eq.s32.totalorder %s18, 2
    %p156 = por %p154, %p155
    %p158 = scmp.ne.s32.totalorder %s143, %s157
    %p159 = scmp.eq.s32.totalorder %s18, 0
    %p160 = por %p158, %p159
    %s161 = ssub.s32 %s12, %s19
    %p162 = scmp.eq.s32.totalorder %s161, 0
    %s164 = sadd.s32 %s163, 1
    %s165 = scalar_select %p162, %s163, %s164
    %p168 = pneg %p162
    %p169 = scmp.eq.s32.totalorder %s12, 2
    %p170 = por %p168, %p169
    %p171 = scmp.ne.s32.totalorder %s163, %s166
    %p172 = scmp.eq.s32.totalorder %s12, 0
    %p173 = por %p171, %p172
    %p174 = scmp.ne.s32.totalorder %s163, %s166
    %p175 = scmp.eq.s32.totalorder %s17, 2
    %p176 = por %p174, %p175
    %p177 = scmp.ne.s32.totalorder %s166, %s167
    %p178 = scmp.eq.s32.totalorder %s17, 0
    %p179 = por %p177, %p178
    %p180 = scmp.ne.s32.totalorder %s166, %s167
    %p181 = scmp.eq.s32.totalorder %s18, 2
    %p182 = por %p180, %p181
    %p184 = scmp.ne.s32.totalorder %s167, %s183
    %p185 = scmp.eq.s32.totalorder %s18, 0
    %p186 = por %p184, %p185
    %p187 = scmp.le.s32.totalorder 1, %s12
    %p188 = scmp.lt.s32.totalorder %s12, 4
    %p189 = pnand %p187, %p188
    %p190 = pneg %p189
    // Predicated region
    $region9: #{personalized_embedding_forward.1} parent=5 // pred_check
      _
    $region10: #{personalized_embedding_forward.1} parent=5 // pred_check_branch
      %192 = sbr.rel (%p189) target = $region12
    $region11: #{personalized_embedding_forward.1} parent=5 // pred_region
      %s193 = ssub.s32 %s12, 1
      // Predicated region
      $region13: #{personalized_embedding_forward.1} parent=11 // pred_check
        %p194 = pneg %p111
      $region14: #{personalized_embedding_forward.1} parent=11 // pred_check_branch
        %196 = sbr.rel (%p194) target = $region16
      $region15: #{personalized_embedding_forward.1} parent=11 // pred_region
        _
      $region16: #{personalized_embedding_forward.1} parent=11 // pred_fallthru
        _
      // Predicated region
      $region17: #{personalized_embedding_forward.1} parent=11 // pred_check
        %p197 = pneg %p132
      $region18: #{personalized_embedding_forward.1} parent=11 // pred_check_branch
        %199 = sbr.rel (%p197) target = $region20
      $region19: #{personalized_embedding_forward.1} parent=11 // pred_region
        _
      $region20: #{personalized_embedding_forward.1} parent=11 // pred_fallthru
        _
      // Predicated region
      $region21: #{personalized_embedding_forward.1} parent=11 // pred_check
        %p200 = pneg %p153
      $region22: #{personalized_embedding_forward.1} parent=11 // pred_check_branch
        %202 = sbr.rel (%p200) target = $region24
      $region23: #{personalized_embedding_forward.1} parent=11 // pred_region
        _
      $region24: #{personalized_embedding_forward.1} parent=11 // pred_fallthru
        _
    $region12: #{personalized_embedding_forward.1} parent=5 // pred_fallthru
      _
    %p203 = scmp.lt.s32.totalorder %s12, 3
    // Predicated region
    $region25: #{personalized_embedding_forward.1} parent=5 // pred_check
      %p204 = pneg %p203
    $region26: #{personalized_embedding_forward.1} parent=5 // pred_check_branch
      %206 = sbr.rel (%p204) target = $region28
    $region27: #{personalized_embedding_forward.1} parent=5 // pred_region
      // Predicated region
      $region29: #{personalized_embedding_forward.1} parent=27 // pred_check
        %p207 = pneg %p32
      $region30: #{personalized_embedding_forward.1} parent=27 // pred_check_branch
        %209 = sbr.rel (%p207) target = $region32
      $region31: #{personalized_embedding_forward.1} parent=27 // pred_region
        %s210 = smul.u32 2, %s12
        %p211 = scmp.lt.s32.totalorder %s210, 5
        %s212 = scalar_select %p211, %s210, 5
        %s213 = smul.addr %s212, 8
        %s214 = scalar_lea.vmem %s0, %s213
        %s215 = smul.u32 2, %s12
      $region32: #{personalized_embedding_forward.1} parent=27 // pred_fallthru
        _
      // Predicated region
      $region33: #{personalized_embedding_forward.1} parent=27 // pred_check
        %p216 = pneg %p58
      $region34: #{personalized_embedding_forward.1} parent=27 // pred_check_branch
        %218 = sbr.rel (%p216) target = $region36
      $region35: #{personalized_embedding_forward.1} parent=27 // pred_region
        %s219 = smul.u32 2, %s12
        %p220 = scmp.lt.s32.totalorder %s219, 5
        %s221 = scalar_select %p220, %s219, 5
        %s222 = smul.addr %s221, 8
        %s223 = scalar_lea.vmem %s1, %s222
        %s224 = smul.u32 2, %s12
      $region36: #{personalized_embedding_forward.1} parent=27 // pred_fallthru
        _
      // Predicated region
      $region37: #{personalized_embedding_forward.1} parent=27 // pred_check
        %p225 = pneg %p84
      $region38: #{personalized_embedding_forward.1} parent=27 // pred_check_branch
        %227 = sbr.rel (%p225) target = $region40
      $region39: #{personalized_embedding_forward.1} parent=27 // pred_region
        %s228 = smul.u32 2, %s12
        %p229 = scmp.lt.s32.totalorder %s228, 5
        %s230 = scalar_select %p229, %s228, 5
        %s231 = smul.addr %s230, 8
        %s232 = scalar_lea.vmem %s2, %s231
        %s233 = smul.u32 2, %s12
      $region40: #{personalized_embedding_forward.1} parent=27 // pred_fallthru
        _
    $region28: #{personalized_embedding_forward.1} parent=5 // pred_fallthru
      _
    %p234 = scmp.le.s32.totalorder 1, %s12
    %p235 = scmp.lt.s32.totalorder %s12, 4
    %p236 = pnand %p234, %p235
    %p237 = pneg %p236
    // Predicated region
    $region41: #{personalized_embedding_forward.1} parent=5 // pred_check
      _
    $region42: #{personalized_embedding_forward.1} parent=5 // pred_check_branch
      %239 = sbr.rel (%p236) target = $region44
    $region43: #{personalized_embedding_forward.1} parent=5 // pred_region
      %s240 = ssub.s32 %s12, 1
      %s241 = smul.u32 2, %s17
      %p242 = scmp.lt.s32.totalorder %s241, 5
      %s243 = scalar_select %p242, %s241, 5
      %s244 = smul.addr %s243, 8
      %s245 = scalar_lea.vmem %s0, %s244
      %p246 = pneg %p38
      %p247 = pneg %p35
      %s248 = smul.u32 2, %s17
      %p249 = scmp.lt.s32.totalorder %s248, 5
      %s250 = scalar_select %p249, %s248, 5
      %s251 = smul.addr %s250, 8
      %s252 = scalar_lea.vmem %s1, %s251
      %p253 = pneg %p64
      %p254 = pneg %p61
      %s255 = smul.u32 2, %s17
      %p256 = scmp.lt.s32.totalorder %s255, 5
      %s257 = scalar_select %p256, %s255, 5
      %s258 = smul.addr %s257, 8
      %s259 = scalar_lea.vmem %s2, %s258
      %p260 = pneg %p90
      %p261 = pneg %p87
      %p262 = pneg %p111
      %p263 = pneg %p108
      %p264 = pneg %p132
      %p265 = pneg %p129
      %p266 = pneg %p153
      %p267 = pneg %p150
      %p268 = pneg %p179
      %p269 = pneg %p176
      %s270 = smul.u32 2, %s17
      %p271 = scmp.lt.s32.totalorder %s270, 5
      %s272 = scalar_select %p271, %s270, 5
      %s273 = smul.addr %s272, 8
      %s274 = scalar_lea.vmem %s6, %s273
      %s275 = smul.u32 2, %s17
      %p276 = scmp.lt.s32.totalorder %s275, 5
      %s277 = scalar_select %p276, %s275, 5
      %s278 = smul.addr %s277, 8
      %s279 = scalar_lea.vmem %s0, %s278
      %s280 = smul.u32 2, %s17
      %s281 = smul.u32 2, %s17
      %p282 = scmp.lt.s32.totalorder %s281, 5
      %s283 = scalar_select %p282, %s281, 5
      %s284 = smul.addr %s283, 8
      %s285 = scalar_lea.vmem %s1, %s284
      %s286 = smul.u32 2, %s17
      %s287 = smul.u32 2, %s17
      %p288 = scmp.lt.s32.totalorder %s287, 5
      %s289 = scalar_select %p288, %s287, 5
      %s290 = smul.addr %s289, 8
      %s291 = scalar_lea.vmem %s2, %s290
      %s292 = smul.u32 2, %s17
      %s293 = smul.u32 2, %s17
      %p294 = scmp.lt.s32.totalorder %s293, 5
      %s295 = scalar_select %p294, %s293, 5
      %s296 = smul.addr %s295, 8
      %s297 = scalar_lea.vmem %s6, %s296
      %s298 = smul.u32 2, %s17
      %v299 = vld [vmem:[%s3] sm:$0xff]
      %v300 = vld [vmem:[%s3 + $0x8] sm:$0xff]
      %v301 = vld [vmem:[%s3 + $0x10] sm:$0xff]
      %v302 = vld [vmem:[%s3 + $0x18] sm:$0xff]
      %v303 = vld [vmem:[%s4] sm:$0xff]
      %v304 = vld [vmem:[%s4 + $0x8] sm:$0xff]
      %v305 = vld [vmem:[%s4 + $0x10] sm:$0xff]
      %v306 = vld [vmem:[%s4 + $0x18] sm:$0xff]
      %v307 = vld [vmem:[%s4 + $0x20] sm:$0xff]
      %v308 = vld [vmem:[%s4 + $0x28] sm:$0xff]
      %v309 = vld [vmem:[%s4 + $0x30] sm:$0xff]
      %v310 = vld [vmem:[%s4 + $0x38] sm:$0xff]
      %v311 = vld [vmem:[%s5] sm:$0xff]
      %v312 = vld [vmem:[%s5 + $0x8] sm:$0xff]
      %v313 = vld [vmem:[%s5 + $0x10] sm:$0xff]
      %v314 = vld [vmem:[%s5 + $0x18] sm:$0xff]
      %v315 = vld [vmem:[%s5 + $0x20] sm:$0xff]
      %v316 = vld [vmem:[%s5 + $0x28] sm:$0xff]
      %v317 = vld [vmem:[%s5 + $0x30] sm:$0xff]
      %v318 = vld [vmem:[%s5 + $0x38] sm:$0xff]
      %v319 = vld [vmem:[%s279] sm:$0xff]
      %v320 = vld [vmem:[%s279 + $0x8] sm:$0xff]
      %v321 = vld [vmem:[%s285] sm:$0xff]
      %v322 = vld [vmem:[%s285 + $0x8] sm:$0xff]
      %v323 = vld [vmem:[%s291] sm:$0xff]
      %v324 = vld [vmem:[%s291 + $0x8] sm:$0xff]
      %v325 = vlaneseq
      %v326 = vand.u32 %v325, 127
      %327 = vset.pattern.permute.xlu0 0
      %328 = vperm.xlu0 %327, %v319
      %v329 = vpop.permute.xlu0 %328
      %330 = vset.pattern.permute.xlu0 0
      %331 = vperm.xlu0 %330, %v320
      %v332 = vpop.permute.xlu0 %331
      %vm333 = vcmp.eq.s32.totalorder %v329, %v326
      %vm334 = vcmp.eq.s32.totalorder %v332, %v326
      %v335 = vsel %vm333, 1, 0
      %v336 = vsel %vm334, 1, 0
      %v337 = vcvt.s32.f32 %v335
      %v338 = vcvt.s32.f32 %v336
      %339 = vset.pattern.permute.xlu0 0
      %340 = vperm.xlu0 %339, %v321
      %v341 = vpop.permute.xlu0 %340
      %342 = vset.pattern.permute.xlu0 0
      %343 = vperm.xlu0 %342, %v322
      %v344 = vpop.permute.xlu0 %343
      %vm345 = vcmp.eq.s32.totalorder %v341, %v326
      %vm346 = vcmp.eq.s32.totalorder %v344, %v326
      %v347 = vsel %vm345, 1, 0
      %v348 = vsel %vm346, 1, 0
      %v349 = vcvt.s32.f32 %v347
      %v350 = vcvt.s32.f32 %v348
      %vm351 = vcmask 523264
      %v353 = vsel %vm351, %v349, 0
      %v356 = vsel %vm351, %v350, 0
      %358 = vmatprep.subr.mxu0 0.0
      %v359 = vand.u32 %v303, 4294901760
      %360 = vmatpush1.msra.mxu0 %v359
      %361 = vmatprep.subr.mxu0 0.0
      %v362 = vand.u32 %v304, 4294901760
      %363 = vmatpush1.msra.mxu0 %v362
      %364 = vmatprep.subr.mxu0 0.0
      %v365 = vand.u32 %v305, 4294901760
      %366 = vmatpush1.msra.mxu0 %v365
      %367 = vmatprep.subr.mxu0 0.0
      %v368 = vand.u32 %v306, 4294901760
      %369 = vmatpush1.msra.mxu0 %v368
      %370 = vmatprep.subr.mxu0 0.0
      %v371 = vand.u32 %v307, 4294901760
      %372 = vmatpush1.msra.mxu0 %v371
      %373 = vmatprep.subr.mxu0 0.0
      %v374 = vand.u32 %v308, 4294901760
      %375 = vmatpush1.msra.mxu0 %v374
      %376 = vmatprep.subr.mxu0 0.0
      %v377 = vand.u32 %v309, 4294901760
      %378 = vmatpush1.msra.mxu0 %v377
      %379 = vmatprep.subr.mxu0 0.0
      %v380 = vand.u32 %v310, 4294901760
      %381 = vmatpush1.msra.mxu0 %v380
      %382 = vmatprep.subr.mxu0 0.0
      %383 = vmatpush1.msra.mxu0 0.0
      %384 = vmatprep.subr.mxu0 0.0
      %385 = vmatpush1.msra.mxu0 0.0
      %386 = vmatprep.subr.mxu0 0.0
      %387 = vmatpush1.msra.mxu0 0.0
      %388 = vmatprep.subr.mxu0 0.0
      %389 = vmatpush1.msra.mxu0 0.0
      %390 = vmatprep.subr.mxu0 0.0
      %391 = vmatpush1.msra.mxu0 0.0
      %392 = vmatprep.subr.mxu0 0.0
      %393 = vmatpush1.msra.mxu0 0.0
      %394 = vmatprep.subr.mxu0 0.0
      %395 = vmatpush1.msra.mxu0 0.0
      %396 = vmatprep.subr.mxu0 0.0
      %397 = vmatpush1.msra.mxu0 0.0
      %398 = vmatprep.subr.mxu0 0.0
      %399 = vmatpush1.msra.mxu0 0.0
      %400 = vmatprep.subr.mxu0 0.0
      %401 = vmatpush1.msra.mxu0 0.0
      %402 = vmatprep.subr.mxu0 0.0
      %403 = vmatpush1.msra.mxu0 0.0
      %404 = vmatprep.subr.mxu0 0.0
      %405 = vmatpush1.msra.mxu0 0.0
      %406 = vmatprep.subr.mxu0 0.0
      %407 = vmatpush1.msra.mxu0 0.0
      %408 = vmatprep.subr.mxu0 0.0
      %409 = vmatpush1.msra.mxu0 0.0
      %410 = vmatprep.subr.mxu0 0.0
      %411 = vmatpush1.msra.mxu0 0.0
      %412 = vmatprep.subr.mxu0 0.0
      %413 = vmatpush1.msra.mxu0 0.0
      %414 = vmatprep.subr.mxu0 0.0
      %415 = vmatpush1.msra.mxu0 0.0
      %416 = vmatprep.subr.mxu0 0.0
      %417 = vmatpush1.msra.mxu0 0.0
      %418 = vmatprep.subr.mxu0 0.0
      %419 = vmatpush1.msra.mxu0 0.0
      %420 = vmatprep.subr.mxu0 0.0
      %421 = vmatpush1.msra.mxu0 0.0
      %422 = vmatprep.subr.mxu0 0.0
      %423 = vmatpush1.msra.mxu0 0.0
      %424 = vmatprep.subr.mxu0 0.0
      %425 = vmatpush1.msra.mxu0 0.0
      %426 = vmatprep.subr.mxu0 0.0
      %427 = vmatpush1.msra.mxu0 0.0
      %428 = vmatprep.subr.mxu0 0.0
      %429 = vmatpush1.msra.mxu0 0.0
      %430 = vmatprep.mubr.f32.mxu0 0.0
      %v431 = vand.u32 %v353, 4294901760
      %v432 = vsub.f32 %v353, %v431
      %v433 = vand.u32 %v432, 4294901760
      %v434 = vsub.f32 %v432, %v433
      %v435 = vand.u32 %v434, 4294901760
      %436 = vmatmul.mubr.f32.gmra.mrb[0].mxu0 %v435
      %v437 = vpop.f32.mrb[0].mxu0
      %v438 = vadd.f32 0.0, %v437
      %v439 = vpop.f32.mrb[0].mxu0
      %440 = vmatprep.mubr.f32.mxu0 0.0
      %v441 = vand.u32 %v356, 4294901760
      %v442 = vsub.f32 %v356, %v441
      %v443 = vand.u32 %v442, 4294901760
      %v444 = vsub.f32 %v442, %v443
      %v445 = vand.u32 %v444, 4294901760
      %446 = vmatmul.mubr.f32.gmra.mrb[0].mxu0 %v445
      %v447 = vpop.f32.mrb[0].mxu0
      %v448 = vadd.f32 0.0, %v447
      %v449 = vpop.f32.mrb[0].mxu0
      %450 = vdwg.mxu0
      %451 = vmatprep.subr.mxu0 0.0
      %v452 = vand.u32 %v303, 4294901760
      %v453 = vsub.f32 %v303, %v452
      %v454 = vand.u32 %v453, 4294901760
      %v455 = vsub.f32 %v453, %v454
      %v456 = vand.u32 %v455, 4294901760
      %457 = vmatpush1.msra.mxu0 %v456
      %458 = vmatprep.subr.mxu0 0.0
      %v459 = vand.u32 %v304, 4294901760
      %v460 = vsub.f32 %v304, %v459
      %v461 = vand.u32 %v460, 4294901760
      %v462 = vsub.f32 %v460, %v461
      %v463 = vand.u32 %v462, 4294901760
      %464 = vmatpush1.msra.mxu0 %v463
      %465 = vmatprep.subr.mxu0 0.0
      %v466 = vand.u32 %v305, 4294901760
      %v467 = vsub.f32 %v305, %v466
      %v468 = vand.u32 %v467, 4294901760
      %v469 = vsub.f32 %v467, %v468
      %v470 = vand.u32 %v469, 4294901760
      %471 = vmatpush1.msra.mxu0 %v470
      %472 = vmatprep.subr.mxu0 0.0
      %v473 = vand.u32 %v306, 4294901760
      %v474 = vsub.f32 %v306, %v473
      %v475 = vand.u32 %v474, 4294901760
      %v476 = vsub.f32 %v474, %v475
      %v477 = vand.u32 %v476, 4294901760
      %478 = vmatpush1.msra.mxu0 %v477
      %479 = vmatprep.subr.mxu0 0.0
      %v480 = vand.u32 %v307, 4294901760
      %v481 = vsub.f32 %v307, %v480
      %v482 = vand.u32 %v481, 4294901760
      %v483 = vsub.f32 %v481, %v482
      %v484 = vand.u32 %v483, 4294901760
      %485 = vmatpush1.msra.mxu0 %v484
      %486 = vmatprep.subr.mxu0 0.0
      %v487 = vand.u32 %v308, 4294901760
      %v488 = vsub.f32 %v308, %v487
      %v489 = vand.u32 %v488, 4294901760
      %v490 = vsub.f32 %v488, %v489
      %v491 = vand.u32 %v490, 4294901760
      %492 = vmatpush1.msra.mxu0 %v491
      %493 = vmatprep.subr.mxu0 0.0
      %v494 = vand.u32 %v309, 4294901760
      %v495 = vsub.f32 %v309, %v494
      %v496 = vand.u32 %v495, 4294901760
      %v497 = vsub.f32 %v495, %v496
      %v498 = vand.u32 %v497, 4294901760
      %499 = vmatpush1.msra.mxu0 %v498
      %500 = vmatprep.subr.mxu0 0.0
      %v501 = vand.u32 %v310, 4294901760
      %v502 = vsub.f32 %v310, %v501
      %v503 = vand.u32 %v502, 4294901760
      %v504 = vsub.f32 %v502, %v503
      %v505 = vand.u32 %v504, 4294901760
      %506 = vmatpush1.msra.mxu0 %v505
      %507 = vmatprep.subr.mxu0 0.0
      %508 = vmatpush1.msra.mxu0 0.0
      %509 = vmatprep.subr.mxu0 0.0
      %510 = vmatpush1.msra.mxu0 0.0
      %511 = vmatprep.subr.mxu0 0.0
      %512 = vmatpush1.msra.mxu0 0.0
      %513 = vmatprep.subr.mxu0 0.0
      %514 = vmatpush1.msra.mxu0 0.0
      %515 = vmatprep.subr.mxu0 0.0
      %516 = vmatpush1.msra.mxu0 0.0
      %517 = vmatprep.subr.mxu0 0.0
      %518 = vmatpush1.msra.mxu0 0.0
      %519 = vmatprep.subr.mxu0 0.0
      %520 = vmatpush1.msra.mxu0 0.0
      %521 = vmatprep.subr.mxu0 0.0
      %522 = vmatpush1.msra.mxu0 0.0
      %523 = vmatprep.subr.mxu0 0.0
      %524 = vmatpush1.msra.mxu0 0.0
      %525 = vmatprep.subr.mxu0 0.0
      %526 = vmatpush1.msra.mxu0 0.0
      %527 = vmatprep.subr.mxu0 0.0
      %528 = vmatpush1.msra.mxu0 0.0
      %529 = vmatprep.subr.mxu0 0.0
      %530 = vmatpush1.msra.mxu0 0.0
      %531 = vmatprep.subr.mxu0 0.0
      %532 = vmatpush1.msra.mxu0 0.0
      %533 = vmatprep.subr.mxu0 0.0
      %534 = vmatpush1.msra.mxu0 0.0
      %535 = vmatprep.subr.mxu0 0.0
      %536 = vmatpush1.msra.mxu0 0.0
      %537 = vmatprep.subr.mxu0 0.0
      %538 = vmatpush1.msra.mxu0 0.0
      %539 = vmatprep.subr.mxu0 0.0
      %540 = vmatpush1.msra.mxu0 0.0
      %541 = vmatprep.subr.mxu0 0.0
      %542 = vmatpush1.msra.mxu0 0.0
      %543 = vmatprep.subr.mxu0 0.0
      %544 = vmatpush1.msra.mxu0 0.0
      %545 = vmatprep.subr.mxu0 0.0
      %546 = vmatpush1.msra.mxu0 0.0
      %547 = vmatprep.subr.mxu0 0.0
      %548 = vmatpush1.msra.mxu0 0.0
      %549 = vmatprep.subr.mxu0 0.0
      %550 = vmatpush1.msra.mxu0 0.0
      %551 = vmatprep.subr.mxu0 0.0
      %552 = vmatpush1.msra.mxu0 0.0
      %553 = vmatprep.subr.mxu0 0.0
      %554 = vmatpush1.msra.mxu0 0.0
      %555 = vmatprep.mubr.f32.mxu0 0.0
      %v556 = vand.u32 %v353, 4294901760
      %557 = vmatmul.mubr.f32.gmra.mrb[0].mxu0 %v556
      %v558 = vpop.f32.mrb[0].mxu0
      %v559 = vadd.f32 %v438, %v558
      %v560 = vpop.f32.mrb[0].mxu0
      %561 = vmatprep.mubr.f32.mxu0 0.0
      %v562 = vand.u32 %v356, 4294901760
      %563 = vmatmul.mubr.f32.gmra.mrb[0].mxu0 %v562
      %v564 = vpop.f32.mrb[0].mxu0
      %v565 = vadd.f32 %v448, %v564
      %v566 = vpop.f32.mrb[0].mxu0
      %567 = vdwg.mxu0
      %568 = vmatprep.subr.mxu0 0.0
      %v569 = vand.u32 %v303, 4294901760
      %v570 = vsub.f32 %v303, %v569
      %571 = vmatpush1.msra.mxu0 %v570
      %572 = vmatprep.subr.mxu0 0.0
      %v573 = vand.u32 %v304, 4294901760
      %v574 = vsub.f32 %v304, %v573
      %575 = vmatpush1.msra.mxu0 %v574
      %576 = vmatprep.subr.mxu0 0.0
      %v577 = vand.u32 %v305, 4294901760
      %v578 = vsub.f32 %v305, %v577
      %579 = vmatpush1.msra.mxu0 %v578
      %580 = vmatprep.subr.mxu0 0.0
      %v581 = vand.u32 %v306, 4294901760
      %v582 = vsub.f32 %v306, %v581
      %583 = vmatpush1.msra.mxu0 %v582
      %584 = vmatprep.subr.mxu0 0.0
      %v585 = vand.u32 %v307, 4294901760
      %v586 = vsub.f32 %v307, %v585
      %587 = vmatpush1.msra.mxu0 %v586
      %588 = vmatprep.subr.mxu0 0.0
      %v589 = vand.u32 %v308, 4294901760
      %v590 = vsub.f32 %v308, %v589
      %591 = vmatpush1.msra.mxu0 %v590
      %592 = vmatprep.subr.mxu0 0.0
      %v593 = vand.u32 %v309, 4294901760
      %v594 = vsub.f32 %v309, %v593
      %595 = vmatpush1.msra.mxu0 %v594
      %596 = vmatprep.subr.mxu0 0.0
      %v597 = vand.u32 %v310, 4294901760
      %v598 = vsub.f32 %v310, %v597
      %599 = vmatpush1.msra.mxu0 %v598
      %600 = vmatprep.subr.mxu0 0.0
      %601 = vmatpush1.msra.mxu0 0.0
      %602 = vmatprep.subr.mxu0 0.0
      %603 = vmatpush1.msra.mxu0 0.0
      %604 = vmatprep.subr.mxu0 0.0
      %605 = vmatpush1.msra.mxu0 0.0
      %606 = vmatprep.subr.mxu0 0.0
      %607 = vmatpush1.msra.mxu0 0.0
      %608 = vmatprep.subr.mxu0 0.0
      %609 = vmatpush1.msra.mxu0 0.0
      %610 = vmatprep.subr.mxu0 0.0
      %611 = vmatpush1.msra.mxu0 0.0
      %612 = vmatprep.subr.mxu0 0.0
      %613 = vmatpush1.msra.mxu0 0.0
      %614 = vmatprep.subr.mxu0 0.0
      %615 = vmatpush1.msra.mxu0 0.0
      %616 = vmatprep.subr.mxu0 0.0
      %617 = vmatpush1.msra.mxu0 0.0
      %618 = vmatprep.subr.mxu0 0.0
      %619 = vmatpush1.msra.mxu0 0.0
      %620 = vmatprep.subr.mxu0 0.0
      %621 = vmatpush1.msra.mxu0 0.0
      %622 = vmatprep.subr.mxu0 0.0
      %623 = vmatpush1.msra.mxu0 0.0
      %624 = vmatprep.subr.mxu0 0.0
      %625 = vmatpush1.msra.mxu0 0.0
      %626 = vmatprep.subr.mxu0 0.0
      %627 = vmatpush1.msra.mxu0 0.0
      %628 = vmatprep.subr.mxu0 0.0
      %629 = vmatpush1.msra.mxu0 0.0
      %630 = vmatprep.subr.mxu0 0.0
      %631 = vmatpush1.msra.mxu0 0.0
      %632 = vmatprep.subr.mxu0 0.0
      %633 = vmatpush1.msra.mxu0 0.0
      %634 = vmatprep.subr.mxu0 0.0
      %635 = vmatpush1.msra.mxu0 0.0
      %636 = vmatprep.subr.mxu0 0.0
      %637 = vmatpush1.msra.mxu0 0.0
      %638 = vmatprep.subr.mxu0 0.0
      %639 = vmatpush1.msra.mxu0 0.0
      %640 = vmatprep.subr.mxu0 0.0
      %641 = vmatpush1.msra.mxu0 0.0
      %642 = vmatprep.subr.mxu0 0.0
      %643 = vmatpush1.msra.mxu0 0.0
      %644 = vmatprep.subr.mxu0 0.0
      %645 = vmatpush1.msra.mxu0 0.0
      %646 = vmatprep.subr.mxu0 0.0
      %647 = vmatpush1.msra.mxu0 0.0
      %648 = vmatprep.mubr.f32.mxu0 0.0
      %v649 = vand.u32 %v353, 4294901760
      %v650 = vsub.f32 %v353, %v649
      %651 = vmatmul.mubr.f32.gmra.mrb[0].mxu0 %v650
      %v652 = vpop.f32.mrb[0].mxu0
      %v653 = vadd.f32 %v559, %v652
      %v654 = vpop.f32.mrb[0].mxu0
      %655 = vmatprep.mubr.f32.mxu0 0.0
      %v656 = vand.u32 %v356, 4294901760
      %v657 = vsub.f32 %v356, %v656
      %658 = vmatmul.mubr.f32.gmra.mrb[0].mxu0 %v657
      %v659 = vpop.f32.mrb[0].mxu0
      %v660 = vadd.f32 %v565, %v659
      %v661 = vpop.f32.mrb[0].mxu0
      %662 = vdwg.mxu0
      %663 = vmatprep.subr.mxu0 0.0
      %v664 = vand.u32 %v303, 4294901760
      %665 = vmatpush1.msra.mxu0 %v664
      %666 = vmatprep.subr.mxu0 0.0
      %v667 = vand.u32 %v304, 4294901760
      %668 = vmatpush1.msra.mxu0 %v667
      %669 = vmatprep.subr.mxu0 0.0
      %v670 = vand.u32 %v305, 4294901760
      %671 = vmatpush1.msra.mxu0 %v670
      %672 = vmatprep.subr.mxu0 0.0
      %v673 = vand.u32 %v306, 4294901760
      %674 = vmatpush1.msra.mxu0 %v673
      %675 = vmatprep.subr.mxu0 0.0
      %v676 = vand.u32 %v307, 4294901760
      %677 = vmatpush1.msra.mxu0 %v676
      %678 = vmatprep.subr.mxu0 0.0
      %v679 = vand.u32 %v308, 4294901760
      %680 = vmatpush1.msra.mxu0 %v679
      %681 = vmatprep.subr.mxu0 0.0
      %v682 = vand.u32 %v309, 4294901760
      %683 = vmatpush1.msra.mxu0 %v682
      %684 = vmatprep.subr.mxu0 0.0
      %v685 = vand.u32 %v310, 4294901760
      %686 = vmatpush1.msra.mxu0 %v685
      %687 = vmatprep.subr.mxu0 0.0
      %688 = vmatpush1.msra.mxu0 0.0
      %689 = vmatprep.subr.mxu0 0.0
      %690 = vmatpush1.msra.mxu0 0.0
      %691 = vmatprep.subr.mxu0 0.0
      %692 = vmatpush1.msra.mxu0 0.0
      %693 = vmatprep.subr.mxu0 0.0
      %694 = vmatpush1.msra.mxu0 0.0
      %695 = vmatprep.subr.mxu0 0.0
      %696 = vmatpush1.msra.mxu0 0.0
      %697 = vmatprep.subr.mxu0 0.0
      %698 = vmatpush1.msra.mxu0 0.0
      %699 = vmatprep.subr.mxu0 0.0
      %700 = vmatpush1.msra.mxu0 0.0
      %701 = vmatprep.subr.mxu0 0.0
      %702 = vmatpush1.msra.mxu0 0.0
      %703 = vmatprep.subr.mxu0 0.0
      %704 = vmatpush1.msra.mxu0 0.0
      %705 = vmatprep.subr.mxu0 0.0
      %706 = vmatpush1.msra.mxu0 0.0
      %707 = vmatprep.subr.mxu0 0.0
      %708 = vmatpush1.msra.mxu0 0.0
      %709 = vmatprep.subr.mxu0 0.0
      %710 = vmatpush1.msra.mxu0 0.0
      %711 = vmatprep.subr.mxu0 0.0
      %712 = vmatpush1.msra.mxu0 0.0
      %713 = vmatprep.subr.mxu0 0.0
      %714 = vmatpush1.msra.mxu0 0.0
      %715 = vmatprep.subr.mxu0 0.0
      %716 = vmatpush1.msra.mxu0 0.0
      %717 = vmatprep.subr.mxu0 0.0
      %718 = vmatpush1.msra.mxu0 0.0
      %719 = vmatprep.subr.mxu0 0.0
      %720 = vmatpush1.msra.mxu0 0.0
      %721 = vmatprep.subr.mxu0 0.0
      %722 = vmatpush1.msra.mxu0 0.0
      %723 = vmatprep.subr.mxu0 0.0
      %724 = vmatpush1.msra.mxu0 0.0
      %725 = vmatprep.subr.mxu0 0.0
      %726 = vmatpush1.msra.mxu0 0.0
      %727 = vmatprep.subr.mxu0 0.0
      %728 = vmatpush1.msra.mxu0 0.0
      %729 = vmatprep.subr.mxu0 0.0
      %730 = vmatpush1.msra.mxu0 0.0
      %731 = vmatprep.subr.mxu0 0.0
      %732 = vmatpush1.msra.mxu0 0.0
      %733 = vmatprep.subr.mxu0 0.0
      %734 = vmatpush1.msra.mxu0 0.0
      %735 = vmatprep.mubr.f32.mxu0 0.0
      %v736 = vand.u32 %v353, 4294901760
      %v737 = vsub.f32 %v353, %v736
      %v738 = vand.u32 %v737, 4294901760
      %739 = vmatmul.mubr.f32.gmra.mrb[0].mxu0 %v738
      %v740 = vpop.f32.mrb[0].mxu0
      %v741 = vadd.f32 %v653, %v740
      %v742 = vpop.f32.mrb[0].mxu0
      %743 = vmatprep.mubr.f32.mxu0 0.0
      %v744 = vand.u32 %v356, 4294901760
      %v745 = vsub.f32 %v356, %v744
      %v746 = vand.u32 %v745, 4294901760
      %747 = vmatmul.mubr.f32.gmra.mrb[0].mxu0 %v746
      %v748 = vpop.f32.mrb[0].mxu0
      %v749 = vadd.f32 %v660, %v748
      %v750 = vpop.f32.mrb[0].mxu0
      %751 = vdwg.mxu0
      %752 = vmatprep.subr.mxu0 0.0
      %v753 = vand.u32 %v303, 4294901760
      %v754 = vsub.f32 %v303, %v753
      %v755 = vand.u32 %v754, 4294901760
      %756 = vmatpush1.msra.mxu0 %v755
      %757 = vmatprep.subr.mxu0 0.0
      %v758 = vand.u32 %v304, 4294901760
      %v759 = vsub.f32 %v304, %v758
      %v760 = vand.u32 %v759, 4294901760
      %761 = vmatpush1.msra.mxu0 %v760
      %762 = vmatprep.subr.mxu0 0.0
      %v763 = vand.u32 %v305, 4294901760
      %v764 = vsub.f32 %v305, %v763
      %v765 = vand.u32 %v764, 4294901760
      %766 = vmatpush1.msra.mxu0 %v765
      %767 = vmatprep.subr.mxu0 0.0
      %v768 = vand.u32 %v306, 4294901760
      %v769 = vsub.f32 %v306, %v768
      %v770 = vand.u32 %v769, 4294901760
      %771 = vmatpush1.msra.mxu0 %v770
      %772 = vmatprep.subr.mxu0 0.0
      %v773 = vand.u32 %v307, 4294901760
      %v774 = vsub.f32 %v307, %v773
      %v775 = vand.u32 %v774, 4294901760
      %776 = vmatpush1.msra.mxu0 %v775
      %777 = vmatprep.subr.mxu0 0.0
      %v778 = vand.u32 %v308, 4294901760
      %v779 = vsub.f32 %v308, %v778
      %v780 = vand.u32 %v779, 4294901760
      %781 = vmatpush1.msra.mxu0 %v780
      %782 = vmatprep.subr.mxu0 0.0
      %v783 = vand.u32 %v309, 4294901760
      %v784 = vsub.f32 %v309, %v783
      %v785 = vand.u32 %v784, 4294901760
      %786 = vmatpush1.msra.mxu0 %v785
      %787 = vmatprep.subr.mxu0 0.0
      %v788 = vand.u32 %v310, 4294901760
      %v789 = vsub.f32 %v310, %v788
      %v790 = vand.u32 %v789, 4294901760
      %791 = vmatpush1.msra.mxu0 %v790
      %792 = vmatprep.subr.mxu0 0.0
      %793 = vmatpush1.msra.mxu0 0.0
      %794 = vmatprep.subr.mxu0 0.0
      %795 = vmatpush1.msra.mxu0 0.0
      %796 = vmatprep.subr.mxu0 0.0
      %797 = vmatpush1.msra.mxu0 0.0
      %798 = vmatprep.subr.mxu0 0.0
      %799 = vmatpush1.msra.mxu0 0.0
      %800 = vmatprep.subr.mxu0 0.0
      %801 = vmatpush1.msra.mxu0 0.0
      %802 = vmatprep.subr.mxu0 0.0
      %803 = vmatpush1.msra.mxu0 0.0
      %804 = vmatprep.subr.mxu0 0.0
      %805 = vmatpush1.msra.mxu0 0.0
      %806 = vmatprep.subr.mxu0 0.0
      %807 = vmatpush1.msra.mxu0 0.0
      %808 = vmatprep.subr.mxu0 0.0
      %809 = vmatpush1.msra.mxu0 0.0
      %810 = vmatprep.subr.mxu0 0.0
      %811 = vmatpush1.msra.mxu0 0.0
      %812 = vmatprep.subr.mxu0 0.0
      %813 = vmatpush1.msra.mxu0 0.0
      %814 = vmatprep.subr.mxu0 0.0
      %815 = vmatpush1.msra.mxu0 0.0
      %816 = vmatprep.subr.mxu0 0.0
      %817 = vmatpush1.msra.mxu0 0.0
      %818 = vmatprep.subr.mxu0 0.0
      %819 = vmatpush1.msra.mxu0 0.0
      %820 = vmatprep.subr.mxu0 0.0
      %821 = vmatpush1.msra.mxu0 0.0
      %822 = vmatprep.subr.mxu0 0.0
      %823 = vmatpush1.msra.mxu0 0.0
      %824 = vmatprep.subr.mxu0 0.0
      %825 = vmatpush1.msra.mxu0 0.0
      %826 = vmatprep.subr.mxu0 0.0
      %827 = vmatpush1.msra.mxu0 0.0
      %828 = vmatprep.subr.mxu0 0.0
      %829 = vmatpush1.msra.mxu0 0.0
      %830 = vmatprep.subr.mxu0 0.0
      %831 = vmatpush1.msra.mxu0 0.0
      %832 = vmatprep.subr.mxu0 0.0
      %833 = vmatpush1.msra.mxu0 0.0
      %834 = vmatprep.subr.mxu0 0.0
      %835 = vmatpush1.msra.mxu0 0.0
      %836 = vmatprep.subr.mxu0 0.0
      %837 = vmatpush1.msra.mxu0 0.0
      %838 = vmatprep.subr.mxu0 0.0
      %839 = vmatpush1.msra.mxu0 0.0
      %840 = vmatprep.mubr.f32.mxu0 0.0
      %v841 = vand.u32 %v353, 4294901760
      %842 = vmatmul.mubr.f32.gmra.mrb[0].mxu0 %v841
      %v843 = vpop.f32.mrb[0].mxu0
      %v844 = vadd.f32 %v741, %v843
      %v845 = vpop.f32.mrb[0].mxu0
      %846 = vmatprep.mubr.f32.mxu0 0.0
      %v847 = vand.u32 %v356, 4294901760
      %848 = vmatmul.mubr.f32.gmra.mrb[0].mxu0 %v847
      %v849 = vpop.f32.mrb[0].mxu0
      %v850 = vadd.f32 %v749, %v849
      %v851 = vpop.f32.mrb[0].mxu0
      %852 = vdwg.mxu0
      %853 = vmatprep.subr.mxu0 0.0
      %v854 = vand.u32 %v303, 4294901760
      %855 = vmatpush1.msra.mxu0 %v854
      %856 = vmatprep.subr.mxu0 0.0
      %v857 = vand.u32 %v304, 4294901760
      %858 = vmatpush1.msra.mxu0 %v857
      %859 = vmatprep.subr.mxu0 0.0
      %v860 = vand.u32 %v305, 4294901760
      %861 = vmatpush1.msra.mxu0 %v860
      %862 = vmatprep.subr.mxu0 0.0
      %v863 = vand.u32 %v306, 4294901760
      %864 = vmatpush1.msra.mxu0 %v863
      %865 = vmatprep.subr.mxu0 0.0
      %v866 = vand.u32 %v307, 4294901760
      %867 = vmatpush1.msra.mxu0 %v866
      %868 = vmatprep.subr.mxu0 0.0
      %v869 = vand.u32 %v308, 4294901760
      %870 = vmatpush1.msra.mxu0 %v869
      %871 = vmatprep.subr.mxu0 0.0
      %v872 = vand.u32 %v309, 4294901760
      %873 = vmatpush1.msra.mxu0 %v872
      %874 = vmatprep.subr.mxu0 0.0
      %v875 = vand.u32 %v310, 4294901760
      %876 = vmatpush1.msra.mxu0 %v875
      %877 = vmatprep.subr.mxu0 0.0
      %878 = vmatpush1.msra.mxu0 0.0
      %879 = vmatprep.subr.mxu0 0.0
      %880 = vmatpush1.msra.mxu0 0.0
      %881 = vmatprep.subr.mxu0 0.0
      %882 = vmatpush1.msra.mxu0 0.0
      %883 = vmatprep.subr.mxu0 0.0
      %884 = vmatpush1.msra.mxu0 0.0
      %885 = vmatprep.subr.mxu0 0.0
      %886 = vmatpush1.msra.mxu0 0.0
      %887 = vmatprep.subr.mxu0 0.0
      %888 = vmatpush1.msra.mxu0 0.0
      %889 = vmatprep.subr.mxu0 0.0
      %890 = vmatpush1.msra.mxu0 0.0
      %891 = vmatprep.subr.mxu0 0.0
      %892 = vmatpush1.msra.mxu0 0.0
      %893 = vmatprep.subr.mxu0 0.0
      %894 = vmatpush1.msra.mxu0 0.0
      %895 = vmatprep.subr.mxu0 0.0
      %896 = vmatpush1.msra.mxu0 0.0
      %897 = vmatprep.subr.mxu0 0.0
      %898 = vmatpush1.msra.mxu0 0.0
      %899 = vmatprep.subr.mxu0 0.0
      %900 = vmatpush1.msra.mxu0 0.0
      %901 = vmatprep.subr.mxu0 0.0
      %902 = vmatpush1.msra.mxu0 0.0
      %903 = vmatprep.subr.mxu0 0.0
      %904 = vmatpush1.msra.mxu0 0.0
      %905 = vmatprep.subr.mxu0 0.0
      %906 = vmatpush1.msra.mxu0 0.0
      %907 = vmatprep.subr.mxu0 0.0
      %908 = vmatpush1.msra.mxu0 0.0
      %909 = vmatprep.subr.mxu0 0.0
      %910 = vmatpush1.msra.mxu0 0.0
      %911 = vmatprep.subr.mxu0 0.0
      %912 = vmatpush1.msra.mxu0 0.0
      %913 = vmatprep.subr.mxu0 0.0
      %914 = vmatpush1.msra.mxu0 0.0
      %915 = vmatprep.subr.mxu0 0.0
      %916 = vmatpush1.msra.mxu0 0.0
      %917 = vmatprep.subr.mxu0 0.0
      %918 = vmatpush1.msra.mxu0 0.0
      %919 = vmatprep.subr.mxu0 0.0
      %920 = vmatpush1.msra.mxu0 0.0
      %921 = vmatprep.subr.mxu0 0.0
      %922 = vmatpush1.msra.mxu0 0.0
      %923 = vmatprep.subr.mxu0 0.0
      %924 = vmatpush1.msra.mxu0 0.0
      %925 = vmatprep.mubr.f32.mxu0 0.0
      %v926 = vand.u32 %v353, 4294901760
      %927 = vmatmul.mubr.f32.gmra.mrb[0].mxu0 %v926
      %v928 = vpop.f32.mrb[0].mxu0
      %v929 = vadd.f32 %v844, %v928
      %v930 = vpop.f32.mrb[0].mxu0
      %931 = vmatprep.mubr.f32.mxu0 0.0
      %v932 = vand.u32 %v356, 4294901760
      %933 = vmatmul.mubr.f32.gmra.mrb[0].mxu0 %v932
      %v934 = vpop.f32.mrb[0].mxu0
      %v935 = vadd.f32 %v850, %v934
      %v936 = vpop.f32.mrb[0].mxu0
      %937 = vdwg.mxu0
      %938 = vset.pattern.permute.xlu0 0
      %939 = vperm.xlu0 %938, %v323
      %v940 = vpop.permute.xlu0 %939
      %941 = vset.pattern.permute.xlu0 0
      %942 = vperm.xlu0 %941, %v324
      %v943 = vpop.permute.xlu0 %942
      %vm944 = vcmp.eq.s32.totalorder %v940, %v326
      %vm945 = vcmp.eq.s32.totalorder %v943, %v326
      %v946 = vsel %vm944, 1, 0
      %v947 = vsel %vm945, 1, 0
      %v948 = vcvt.s32.f32 %v946
      %v949 = vcvt.s32.f32 %v947
      %950 = vset.pattern.permute.xlu0 1
      %951 = vperm.xlu0 %950, %v323
      %v952 = vpop.permute.xlu0 %951
      %953 = vset.pattern.permute.xlu0 1
      %954 = vperm.xlu0 %953, %v324
      %v955 = vpop.permute.xlu0 %954
      %vm956 = vcmp.eq.s32.totalorder %v952, %v326
      %vm957 = vcmp.eq.s32.totalorder %v955, %v326
      %v958 = vsel %vm956, 1, 0
      %v959 = vsel %vm957, 1, 0
      %v960 = vcvt.s32.f32 %v958
      %v961 = vcvt.s32.f32 %v959
      %v962 = vadd.f32 %v948, %v960
      %v963 = vadd.f32 %v949, %v961
      %964 = vset.pattern.permute.xlu0 2
      %965 = vperm.xlu0 %964, %v323
      %v966 = vpop.permute.xlu0 %965
      %967 = vset.pattern.permute.xlu0 2
      %968 = vperm.xlu0 %967, %v324
      %v969 = vpop.permute.xlu0 %968
      %vm970 = vcmp.eq.s32.totalorder %v966, %v326
      %vm971 = vcmp.eq.s32.totalorder %v969, %v326
      %v972 = vsel %vm970, 1, 0
      %v973 = vsel %vm971, 1, 0
      %v974 = vcvt.s32.f32 %v972
      %v975 = vcvt.s32.f32 %v973
      %v976 = vadd.f32 %v962, %v974
      %v977 = vadd.f32 %v963, %v975
      %978 = vset.pattern.permute.xlu0 3
      %979 = vperm.xlu0 %978, %v323
      %v980 = vpop.permute.xlu0 %979
      %981 = vset.pattern.permute.xlu0 3
      %982 = vperm.xlu0 %981, %v324
      %v983 = vpop.permute.xlu0 %982
      %vm984 = vcmp.eq.s32.totalorder %v980, %v326
      %vm985 = vcmp.eq.s32.totalorder %v983, %v326
      %v986 = vsel %vm984, 1, 0
      %v987 = vsel %vm985, 1, 0
      %v988 = vcvt.s32.f32 %v986
      %v989 = vcvt.s32.f32 %v987
      %v990 = vadd.f32 %v976, %v988
      %v991 = vadd.f32 %v977, %v989
      %v993 = vsel %vm351, %v990, 0
      %v996 = vsel %vm351, %v991, 0
      %998 = vmatprep.subr.mxu0 0.0
      %v999 = vand.u32 %v311, 4294901760
      %1000 = vmatpush1.msra.mxu0 %v999
      %1001 = vmatprep.subr.mxu0 0.0
      %v1002 = vand.u32 %v312, 4294901760
      %1003 = vmatpush1.msra.mxu0 %v1002
      %1004 = vmatprep.subr.mxu0 0.0
      %v1005 = vand.u32 %v313, 4294901760
      %1006 = vmatpush1.msra.mxu0 %v1005
      %1007 = vmatprep.subr.mxu0 0.0
      %v1008 = vand.u32 %v314, 4294901760
      %1009 = vmatpush1.msra.mxu0 %v1008
      %1010 = vmatprep.subr.mxu0 0.0
      %v1011 = vand.u32 %v315, 4294901760
      %1012 = vmatpush1.msra.mxu0 %v1011
      %1013 = vmatprep.subr.mxu0 0.0
      %v1014 = vand.u32 %v316, 4294901760
      %1015 = vmatpush1.msra.mxu0 %v1014
      %1016 = vmatprep.subr.mxu0 0.0
      %v1017 = vand.u32 %v317, 4294901760
      %1018 = vmatpush1.msra.mxu0 %v1017
      %1019 = vmatprep.subr.mxu0 0.0
      %v1020 = vand.u32 %v318, 4294901760
      %1021 = vmatpush1.msra.mxu0 %v1020
      %1022 = vmatprep.subr.mxu0 0.0
      %1023 = vmatpush1.msra.mxu0 0.0
      %1024 = vmatprep.subr.mxu0 0.0
      %1025 = vmatpush1.msra.mxu0 0.0
      %1026 = vmatprep.subr.mxu0 0.0
      %1027 = vmatpush1.msra.mxu0 0.0
      %1028 = vmatprep.subr.mxu0 0.0
      %1029 = vmatpush1.msra.mxu0 0.0
      %1030 = vmatprep.subr.mxu0 0.0
      %1031 = vmatpush1.msra.mxu0 0.0
      %1032 = vmatprep.subr.mxu0 0.0
      %1033 = vmatpush1.msra.mxu0 0.0
      %1034 = vmatprep.subr.mxu0 0.0
      %1035 = vmatpush1.msra.mxu0 0.0
      %1036 = vmatprep.subr.mxu0 0.0
      %1037 = vmatpush1.msra.mxu0 0.0
      %1038 = vmatprep.subr.mxu0 0.0
      %1039 = vmatpush1.msra.mxu0 0.0
      %1040 = vmatprep.subr.mxu0 0.0
      %1041 = vmatpush1.msra.mxu0 0.0
      %1042 = vmatprep.subr.mxu0 0.0
      %1043 = vmatpush1.msra.mxu0 0.0
      %1044 = vmatprep.subr.mxu0 0.0
      %1045 = vmatpush1.msra.mxu0 0.0
      %1046 = vmatprep.subr.mxu0 0.0
      %1047 = vmatpush1.msra.mxu0 0.0
      %1048 = vmatprep.subr.mxu0 0.0
      %1049 = vmatpush1.msra.mxu0 0.0
      %1050 = vmatprep.subr.mxu0 0.0
      %1051 = vmatpush1.msra.mxu0 0.0
      %1052 = vmatprep.subr.mxu0 0.0
      %1053 = vmatpush1.msra.mxu0 0.0
      %1054 = vmatprep.subr.mxu0 0.0
      %1055 = vmatpush1.msra.mxu0 0.0
      %1056 = vmatprep.subr.mxu0 0.0
      %1057 = vmatpush1.msra.mxu0 0.0
      %1058 = vmatprep.subr.mxu0 0.0
      %1059 = vmatpush1.msra.mxu0 0.0
      %1060 = vmatprep.subr.mxu0 0.0
      %1061 = vmatpush1.msra.mxu0 0.0
      %1062 = vmatprep.subr.mxu0 0.0
      %1063 = vmatpush1.msra.mxu0 0.0
      %1064 = vmatprep.subr.mxu0 0.0
      %1065 = vmatpush1.msra.mxu0 0.0
      %1066 = vmatprep.subr.mxu0 0.0
      %1067 = vmatpush1.msra.mxu0 0.0
      %1068 = vmatprep.subr.mxu0 0.0
      %1069 = vmatpush1.msra.mxu0 0.0
      %1070 = vmatprep.mubr.f32.mxu0 0.0
      %v1071 = vand.u32 %v993, 4294901760
      %v1072 = vsub.f32 %v993, %v1071
      %v1073 = vand.u32 %v1072, 4294901760
      %v1074 = vsub.f32 %v1072, %v1073
      %v1075 = vand.u32 %v1074, 4294901760
      %1076 = vmatmul.mubr.f32.gmra.mrb[0].mxu0 %v1075
      %v1077 = vpop.f32.mrb[0].mxu0
      %v1078 = vadd.f32 0.0, %v1077
      %v1079 = vpop.f32.mrb[0].mxu0
      %1080 = vmatprep.mubr.f32.mxu0 0.0
      %v1081 = vand.u32 %v996, 4294901760
      %v1082 = vsub.f32 %v996, %v1081
      %v1083 = vand.u32 %v1082, 4294901760
      %v1084 = vsub.f32 %v1082, %v1083
      %v1085 = vand.u32 %v1084, 4294901760
      %1086 = vmatmul.mubr.f32.gmra.mrb[0].mxu0 %v1085
      %v1087 = vpop.f32.mrb[0].mxu0
      %v1088 = vadd.f32 0.0, %v1087
      %v1089 = vpop.f32.mrb[0].mxu0
      %1090 = vdwg.mxu0
      %1091 = vmatprep.subr.mxu0 0.0
      %v1092 = vand.u32 %v311, 4294901760
      %v1093 = vsub.f32 %v311, %v1092
      %v1094 = vand.u32 %v1093, 4294901760
      %v1095 = vsub.f32 %v1093, %v1094
      %v1096 = vand.u32 %v1095, 4294901760
      %1097 = vmatpush1.msra.mxu0 %v1096
      %1098 = vmatprep.subr.mxu0 0.0
      %v1099 = vand.u32 %v312, 4294901760
      %v1100 = vsub.f32 %v312, %v1099
      %v1101 = vand.u32 %v1100, 4294901760
      %v1102 = vsub.f32 %v1100, %v1101
      %v1103 = vand.u32 %v1102, 4294901760
      %1104 = vmatpush1.msra.mxu0 %v1103
      %1105 = vmatprep.subr.mxu0 0.0
      %v1106 = vand.u32 %v313, 4294901760
      %v1107 = vsub.f32 %v313, %v1106
      %v1108 = vand.u32 %v1107, 4294901760
      %v1109 = vsub.f32 %v1107, %v1108
      %v1110 = vand.u32 %v1109, 4294901760
      %1111 = vmatpush1.msra.mxu0 %v1110
      %1112 = vmatprep.subr.mxu0 0.0
      %v1113 = vand.u32 %v314, 4294901760
      %v1114 = vsub.f32 %v314, %v1113
      %v1115 = vand.u32 %v1114, 4294901760
      %v1116 = vsub.f32 %v1114, %v1115
      %v1117 = vand.u32 %v1116, 4294901760
      %1118 = vmatpush1.msra.mxu0 %v1117
      %1119 = vmatprep.subr.mxu0 0.0
      %v1120 = vand.u32 %v315, 4294901760
      %v1121 = vsub.f32 %v315, %v1120
      %v1122 = vand.u32 %v1121, 4294901760
      %v1123 = vsub.f32 %v1121, %v1122
      %v1124 = vand.u32 %v1123, 4294901760
      %1125 = vmatpush1.msra.mxu0 %v1124
      %1126 = vmatprep.subr.mxu0 0.0
      %v1127 = vand.u32 %v316, 4294901760
      %v1128 = vsub.f32 %v316, %v1127
      %v1129 = vand.u32 %v1128, 4294901760
      %v1130 = vsub.f32 %v1128, %v1129
      %v1131 = vand.u32 %v1130, 4294901760
      %1132 = vmatpush1.msra.mxu0 %v1131
      %1133 = vmatprep.subr.mxu0 0.0
      %v1134 = vand.u32 %v317, 4294901760
      %v1135 = vsub.f32 %v317, %v1134
      %v1136 = vand.u32 %v1135, 4294901760
      %v1137 = vsub.f32 %v1135, %v1136
      %v1138 = vand.u32 %v1137, 4294901760
      %1139 = vmatpush1.msra.mxu0 %v1138
      %1140 = vmatprep.subr.mxu0 0.0
      %v1141 = vand.u32 %v318, 4294901760
      %v1142 = vsub.f32 %v318, %v1141
      %v1143 = vand.u32 %v1142, 4294901760
      %v1144 = vsub.f32 %v1142, %v1143
      %v1145 = vand.u32 %v1144, 4294901760
      %1146 = vmatpush1.msra.mxu0 %v1145
      %1147 = vmatprep.subr.mxu0 0.0
      %1148 = vmatpush1.msra.mxu0 0.0
      %1149 = vmatprep.subr.mxu0 0.0
      %1150 = vmatpush1.msra.mxu0 0.0
      %1151 = vmatprep.subr.mxu0 0.0
      %1152 = vmatpush1.msra.mxu0 0.0
      %1153 = vmatprep.subr.mxu0 0.0
      %1154 = vmatpush1.msra.mxu0 0.0
      %1155 = vmatprep.subr.mxu0 0.0
      %1156 = vmatpush1.msra.mxu0 0.0
      %1157 = vmatprep.subr.mxu0 0.0
      %1158 = vmatpush1.msra.mxu0 0.0
      %1159 = vmatprep.subr.mxu0 0.0
      %1160 = vmatpush1.msra.mxu0 0.0
      %1161 = vmatprep.subr.mxu0 0.0
      %1162 = vmatpush1.msra.mxu0 0.0
      %1163 = vmatprep.subr.mxu0 0.0
      %1164 = vmatpush1.msra.mxu0 0.0
      %1165 = vmatprep.subr.mxu0 0.0
      %1166 = vmatpush1.msra.mxu0 0.0
      %1167 = vmatprep.subr.mxu0 0.0
      %1168 = vmatpush1.msra.mxu0 0.0
      %1169 = vmatprep.subr.mxu0 0.0
      %1170 = vmatpush1.msra.mxu0 0.0
      %1171 = vmatprep.subr.mxu0 0.0
      %1172 = vmatpush1.msra.mxu0 0.0
      %1173 = vmatprep.subr.mxu0 0.0
      %1174 = vmatpush1.msra.mxu0 0.0
      %1175 = vmatprep.subr.mxu0 0.0
      %1176 = vmatpush1.msra.mxu0 0.0
      %1177 = vmatprep.subr.mxu0 0.0
      %1178 = vmatpush1.msra.mxu0 0.0
      %1179 = vmatprep.subr.mxu0 0.0
      %1180 = vmatpush1.msra.mxu0 0.0
      %1181 = vmatprep.subr.mxu0 0.0
      %1182 = vmatpush1.msra.mxu0 0.0
      %1183 = vmatprep.subr.mxu0 0.0
      %1184 = vmatpush1.msra.mxu0 0.0
      %1185 = vmatprep.subr.mxu0 0.0
      %1186 = vmatpush1.msra.mxu0 0.0
      %1187 = vmatprep.subr.mxu0 0.0
      %1188 = vmatpush1.msra.mxu0 0.0
      %1189 = vmatprep.subr.mxu0 0.0
      %1190 = vmatpush1.msra.mxu0 0.0
      %1191 = vmatprep.subr.mxu0 0.0
      %1192 = vmatpush1.msra.mxu0 0.0
      %1193 = vmatprep.subr.mxu0 0.0
      %1194 = vmatpush1.msra.mxu0 0.0
      %1195 = vmatprep.mubr.f32.mxu0 0.0
      %v1196 = vand.u32 %v993, 4294901760
      %1197 = vmatmul.mubr.f32.gmra.mrb[0].mxu0 %v1196
      %v1198 = vpop.f32.mrb[0].mxu0
      %v1199 = vadd.f32 %v1078, %v1198
      %v1200 = vpop.f32.mrb[0].mxu0
      %1201 = vmatprep.mubr.f32.mxu0 0.0
      %v1202 = vand.u32 %v996, 4294901760
      %1203 = vmatmul.mubr.f32.gmra.mrb[0].mxu0 %v1202
      %v1204 = vpop.f32.mrb[0].mxu0
      %v1205 = vadd.f32 %v1088, %v1204
      %v1206 = vpop.f32.mrb[0].mxu0
      %1207 = vdwg.mxu0
      %1208 = vmatprep.subr.mxu0 0.0
      %v1209 = vand.u32 %v311, 4294901760
      %v1210 = vsub.f32 %v311, %v1209
      %1211 = vmatpush1.msra.mxu0 %v1210
      %1212 = vmatprep.subr.mxu0 0.0
      %v1213 = vand.u32 %v312, 4294901760
      %v1214 = vsub.f32 %v312, %v1213
      %1215 = vmatpush1.msra.mxu0 %v1214
      %1216 = vmatprep.subr.mxu0 0.0
      %v1217 = vand.u32 %v313, 4294901760
      %v1218 = vsub.f32 %v313, %v1217
      %1219 = vmatpush1.msra.mxu0 %v1218
      %1220 = vmatprep.subr.mxu0 0.0
      %v1221 = vand.u32 %v314, 4294901760
      %v1222 = vsub.f32 %v314, %v1221
      %1223 = vmatpush1.msra.mxu0 %v1222
      %1224 = vmatprep.subr.mxu0 0.0
      %v1225 = vand.u32 %v315, 4294901760
      %v1226 = vsub.f32 %v315, %v1225
      %1227 = vmatpush1.msra.mxu0 %v1226
      %1228 = vmatprep.subr.mxu0 0.0
      %v1229 = vand.u32 %v316, 4294901760
      %v1230 = vsub.f32 %v316, %v1229
      %1231 = vmatpush1.msra.mxu0 %v1230
      %1232 = vmatprep.subr.mxu0 0.0
      %v1233 = vand.u32 %v317, 4294901760
      %v1234 = vsub.f32 %v317, %v1233
      %1235 = vmatpush1.msra.mxu0 %v1234
      %1236 = vmatprep.subr.mxu0 0.0
      %v1237 = vand.u32 %v318, 4294901760
      %v1238 = vsub.f32 %v318, %v1237
      %1239 = vmatpush1.msra.mxu0 %v1238
      %1240 = vmatprep.subr.mxu0 0.0
      %1241 = vmatpush1.msra.mxu0 0.0
      %1242 = vmatprep.subr.mxu0 0.0
      %1243 = vmatpush1.msra.mxu0 0.0
      %1244 = vmatprep.subr.mxu0 0.0
      %1245 = vmatpush1.msra.mxu0 0.0
      %1246 = vmatprep.subr.mxu0 0.0
      %1247 = vmatpush1.msra.mxu0 0.0
      %1248 = vmatprep.subr.mxu0 0.0
      %1249 = vmatpush1.msra.mxu0 0.0
      %1250 = vmatprep.subr.mxu0 0.0
      %1251 = vmatpush1.msra.mxu0 0.0
      %1252 = vmatprep.subr.mxu0 0.0
      %1253 = vmatpush1.msra.mxu0 0.0
      %1254 = vmatprep.subr.mxu0 0.0
      %1255 = vmatpush1.msra.mxu0 0.0
      %1256 = vmatprep.subr.mxu0 0.0
      %1257 = vmatpush1.msra.mxu0 0.0
      %1258 = vmatprep.subr.mxu0 0.0
      %1259 = vmatpush1.msra.mxu0 0.0
      %1260 = vmatprep.subr.mxu0 0.0
      %1261 = vmatpush1.msra.mxu0 0.0
      %1262 = vmatprep.subr.mxu0 0.0
      %1263 = vmatpush1.msra.mxu0 0.0
      %1264 = vmatprep.subr.mxu0 0.0
      %1265 = vmatpush1.msra.mxu0 0.0
      %1266 = vmatprep.subr.mxu0 0.0
      %1267 = vmatpush1.msra.mxu0 0.0
      %1268 = vmatprep.subr.mxu0 0.0
      %1269 = vmatpush1.msra.mxu0 0.0
      %1270 = vmatprep.subr.mxu0 0.0
      %1271 = vmatpush1.msra.mxu0 0.0
      %1272 = vmatprep.subr.mxu0 0.0
      %1273 = vmatpush1.msra.mxu0 0.0
      %1274 = vmatprep.subr.mxu0 0.0
      %1275 = vmatpush1.msra.mxu0 0.0
      %1276 = vmatprep.subr.mxu0 0.0
      %1277 = vmatpush1.msra.mxu0 0.0
      %1278 = vmatprep.subr.mxu0 0.0
      %1279 = vmatpush1.msra.mxu0 0.0
      %1280 = vmatprep.subr.mxu0 0.0
      %1281 = vmatpush1.msra.mxu0 0.0
      %1282 = vmatprep.subr.mxu0 0.0
      %1283 = vmatpush1.msra.mxu0 0.0
      %1284 = vmatprep.subr.mxu0 0.0
      %1285 = vmatpush1.msra.mxu0 0.0
      %1286 = vmatprep.subr.mxu0 0.0
      %1287 = vmatpush1.msra.mxu0 0.0
      %1288 = vmatprep.mubr.f32.mxu0 0.0
      %v1289 = vand.u32 %v993, 4294901760
      %v1290 = vsub.f32 %v993, %v1289
      %1291 = vmatmul.mubr.f32.gmra.mrb[0].mxu0 %v1290
      %v1292 = vpop.f32.mrb[0].mxu0
      %v1293 = vadd.f32 %v1199, %v1292
      %v1294 = vpop.f32.mrb[0].mxu0
      %1295 = vmatprep.mubr.f32.mxu0 0.0
      %v1296 = vand.u32 %v996, 4294901760
      %v1297 = vsub.f32 %v996, %v1296
      %1298 = vmatmul.mubr.f32.gmra.mrb[0].mxu0 %v1297
      %v1299 = vpop.f32.mrb[0].mxu0
      %v1300 = vadd.f32 %v1205, %v1299
      %v1301 = vpop.f32.mrb[0].mxu0
      %1302 = vdwg.mxu0
      %1303 = vmatprep.subr.mxu0 0.0
      %v1304 = vand.u32 %v311, 4294901760
      %1305 = vmatpush1.msra.mxu0 %v1304
      %1306 = vmatprep.subr.mxu0 0.0
      %v1307 = vand.u32 %v312, 4294901760
      %1308 = vmatpush1.msra.mxu0 %v1307
      %1309 = vmatprep.subr.mxu0 0.0
      %v1310 = vand.u32 %v313, 4294901760
      %1311 = vmatpush1.msra.mxu0 %v1310
      %1312 = vmatprep.subr.mxu0 0.0
      %v1313 = vand.u32 %v314, 4294901760
      %1314 = vmatpush1.msra.mxu0 %v1313
      %1315 = vmatprep.subr.mxu0 0.0
      %v1316 = vand.u32 %v315, 4294901760
      %1317 = vmatpush1.msra.mxu0 %v1316
      %1318 = vmatprep.subr.mxu0 0.0
      %v1319 = vand.u32 %v316, 4294901760
      %1320 = vmatpush1.msra.mxu0 %v1319
      %1321 = vmatprep.subr.mxu0 0.0
      %v1322 = vand.u32 %v317, 4294901760
      %1323 = vmatpush1.msra.mxu0 %v1322
      %1324 = vmatprep.subr.mxu0 0.0
      %v1325 = vand.u32 %v318, 4294901760
      %1326 = vmatpush1.msra.mxu0 %v1325
      %1327 = vmatprep.subr.mxu0 0.0
      %1328 = vmatpush1.msra.mxu0 0.0
      %1329 = vmatprep.subr.mxu0 0.0
      %1330 = vmatpush1.msra.mxu0 0.0
      %1331 = vmatprep.subr.mxu0 0.0
      %1332 = vmatpush1.msra.mxu0 0.0
      %1333 = vmatprep.subr.mxu0 0.0
      %1334 = vmatpush1.msra.mxu0 0.0
      %1335 = vmatprep.subr.mxu0 0.0
      %1336 = vmatpush1.msra.mxu0 0.0
      %1337 = vmatprep.subr.mxu0 0.0
      %1338 = vmatpush1.msra.mxu0 0.0
      %1339 = vmatprep.subr.mxu0 0.0
      %1340 = vmatpush1.msra.mxu0 0.0
      %1341 = vmatprep.subr.mxu0 0.0
      %1342 = vmatpush1.msra.mxu0 0.0
      %1343 = vmatprep.subr.mxu0 0.0
      %1344 = vmatpush1.msra.mxu0 0.0
      %1345 = vmatprep.subr.mxu0 0.0
      %1346 = vmatpush1.msra.mxu0 0.0
      %1347 = vmatprep.subr.mxu0 0.0
      %1348 = vmatpush1.msra.mxu0 0.0
      %1349 = vmatprep.subr.mxu0 0.0
      %1350 = vmatpush1.msra.mxu0 0.0
      %1351 = vmatprep.subr.mxu0 0.0
      %1352 = vmatpush1.msra.mxu0 0.0
      %1353 = vmatprep.subr.mxu0 0.0
      %1354 = vmatpush1.msra.mxu0 0.0
      %1355 = vmatprep.subr.mxu0 0.0
      %1356 = vmatpush1.msra.mxu0 0.0
      %1357 = vmatprep.subr.mxu0 0.0
      %1358 = vmatpush1.msra.mxu0 0.0
      %1359 = vmatprep.subr.mxu0 0.0
      %1360 = vmatpush1.msra.mxu0 0.0
      %1361 = vmatprep.subr.mxu0 0.0
      %1362 = vmatpush1.msra.mxu0 0.0
      %1363 = vmatprep.subr.mxu0 0.0
      %1364 = vmatpush1.msra.mxu0 0.0
      %1365 = vmatprep.subr.mxu0 0.0
      %1366 = vmatpush1.msra.mxu0 0.0
      %1367 = vmatprep.subr.mxu0 0.0
      %1368 = vmatpush1.msra.mxu0 0.0
      %1369 = vmatprep.subr.mxu0 0.0
      %1370 = vmatpush1.msra.mxu0 0.0
      %1371 = vmatprep.subr.mxu0 0.0
      %1372 = vmatpush1.msra.mxu0 0.0
      %1373 = vmatprep.subr.mxu0 0.0
      %1374 = vmatpush1.msra.mxu0 0.0
      %1375 = vmatprep.mubr.f32.mxu0 0.0
      %v1376 = vand.u32 %v993, 4294901760
      %v1377 = vsub.f32 %v993, %v1376
      %v1378 = vand.u32 %v1377, 4294901760
      %1379 = vmatmul.mubr.f32.gmra.mrb[0].mxu0 %v1378
      %v1380 = vpop.f32.mrb[0].mxu0
      %v1381 = vadd.f32 %v1293, %v1380
      %v1382 = vpop.f32.mrb[0].mxu0
      %1383 = vmatprep.mubr.f32.mxu0 0.0
      %v1384 = vand.u32 %v996, 4294901760
      %v1385 = vsub.f32 %v996, %v1384
      %v1386 = vand.u32 %v1385, 4294901760
      %1387 = vmatmul.mubr.f32.gmra.mrb[0].mxu0 %v1386
      %v1388 = vpop.f32.mrb[0].mxu0
      %v1389 = vadd.f32 %v1300, %v1388
      %v1390 = vpop.f32.mrb[0].mxu0
      %1391 = vdwg.mxu0
      %1392 = vmatprep.subr.mxu0 0.0
      %v1393 = vand.u32 %v311, 4294901760
      %v1394 = vsub.f32 %v311, %v1393
      %v1395 = vand.u32 %v1394, 4294901760
      %1396 = vmatpush1.msra.mxu0 %v1395
      %1397 = vmatprep.subr.mxu0 0.0
      %v1398 = vand.u32 %v312, 4294901760
      %v1399 = vsub.f32 %v312, %v1398
      %v1400 = vand.u32 %v1399, 4294901760
      %1401 = vmatpush1.msra.mxu0 %v1400
      %1402 = vmatprep.subr.mxu0 0.0
      %v1403 = vand.u32 %v313, 4294901760
      %v1404 = vsub.f32 %v313, %v1403
      %v1405 = vand.u32 %v1404, 4294901760
      %1406 = vmatpush1.msra.mxu0 %v1405
      %1407 = vmatprep.subr.mxu0 0.0
      %v1408 = vand.u32 %v314, 4294901760
      %v1409 = vsub.f32 %v314, %v1408
      %v1410 = vand.u32 %v1409, 4294901760
      %1411 = vmatpush1.msra.mxu0 %v1410
      %1412 = vmatprep.subr.mxu0 0.0
      %v1413 = vand.u32 %v315, 4294901760
      %v1414 = vsub.f32 %v315, %v1413
      %v1415 = vand.u32 %v1414, 4294901760
      %1416 = vmatpush1.msra.mxu0 %v1415
      %1417 = vmatprep.subr.mxu0 0.0
      %v1418 = vand.u32 %v316, 4294901760
      %v1419 = vsub.f32 %v316, %v1418
      %v1420 = vand.u32 %v1419, 4294901760
      %1421 = vmatpush1.msra.mxu0 %v1420
      %1422 = vmatprep.subr.mxu0 0.0
      %v1423 = vand.u32 %v317, 4294901760
      %v1424 = vsub.f32 %v317, %v1423
      %v1425 = vand.u32 %v1424, 4294901760
      %1426 = vmatpush1.msra.mxu0 %v1425
      %1427 = vmatprep.subr.mxu0 0.0
      %v1428 = vand.u32 %v318, 4294901760
      %v1429 = vsub.f32 %v318, %v1428
      %v1430 = vand.u32 %v1429, 4294901760
      %1431 = vmatpush1.msra.mxu0 %v1430
      %1432 = vmatprep.subr.mxu0 0.0
      %1433 = vmatpush1.msra.mxu0 0.0
      %1434 = vmatprep.subr.mxu0 0.0
      %1435 = vmatpush1.msra.mxu0 0.0
      %1436 = vmatprep.subr.mxu0 0.0
      %1437 = vmatpush1.msra.mxu0 0.0
      %1438 = vmatprep.subr.mxu0 0.0
      %1439 = vmatpush1.msra.mxu0 0.0
      %1440 = vmatprep.subr.mxu0 0.0
      %1441 = vmatpush1.msra.mxu0 0.0
      %1442 = vmatprep.subr.mxu0 0.0
      %1443 = vmatpush1.msra.mxu0 0.0
      %1444 = vmatprep.subr.mxu0 0.0
      %1445 = vmatpush1.msra.mxu0 0.0
      %1446 = vmatprep.subr.mxu0 0.0
      %1447 = vmatpush1.msra.mxu0 0.0
      %1448 = vmatprep.subr.mxu0 0.0
      %1449 = vmatpush1.msra.mxu0 0.0
      %1450 = vmatprep.subr.mxu0 0.0
      %1451 = vmatpush1.msra.mxu0 0.0
      %1452 = vmatprep.subr.mxu0 0.0
      %1453 = vmatpush1.msra.mxu0 0.0
      %1454 = vmatprep.subr.mxu0 0.0
      %1455 = vmatpush1.msra.mxu0 0.0
      %1456 = vmatprep.subr.mxu0 0.0
      %1457 = vmatpush1.msra.mxu0 0.0
      %1458 = vmatprep.subr.mxu0 0.0
      %1459 = vmatpush1.msra.mxu0 0.0
      %1460 = vmatprep.subr.mxu0 0.0
      %1461 = vmatpush1.msra.mxu0 0.0
      %1462 = vmatprep.subr.mxu0 0.0
      %1463 = vmatpush1.msra.mxu0 0.0
      %1464 = vmatprep.subr.mxu0 0.0
      %1465 = vmatpush1.msra.mxu0 0.0
      %1466 = vmatprep.subr.mxu0 0.0
      %1467 = vmatpush1.msra.mxu0 0.0
      %1468 = vmatprep.subr.mxu0 0.0
      %1469 = vmatpush1.msra.mxu0 0.0
      %1470 = vmatprep.subr.mxu0 0.0
      %1471 = vmatpush1.msra.mxu0 0.0
      %1472 = vmatprep.subr.mxu0 0.0
      %1473 = vmatpush1.msra.mxu0 0.0
      %1474 = vmatprep.subr.mxu0 0.0
      %1475 = vmatpush1.msra.mxu0 0.0
      %1476 = vmatprep.subr.mxu0 0.0
      %1477 = vmatpush1.msra.mxu0 0.0
      %1478 = vmatprep.subr.mxu0 0.0
      %1479 = vmatpush1.msra.mxu0 0.0
      %1480 = vmatprep.mubr.f32.mxu0 0.0
      %v1481 = vand.u32 %v993, 4294901760
      %1482 = vmatmul.mubr.f32.gmra.mrb[0].mxu0 %v1481
      %v1483 = vpop.f32.mrb[0].mxu0
      %v1484 = vadd.f32 %v1381, %v1483
      %v1485 = vpop.f32.mrb[0].mxu0
      %1486 = vmatprep.mubr.f32.mxu0 0.0
      %v1487 = vand.u32 %v996, 4294901760
      %1488 = vmatmul.mubr.f32.gmra.mrb[0].mxu0 %v1487
      %v1489 = vpop.f32.mrb[0].mxu0
      %v1490 = vadd.f32 %v1389, %v1489
      %v1491 = vpop.f32.mrb[0].mxu0
      %1492 = vdwg.mxu0
      %1493 = vmatprep.subr.mxu0 0.0
      %v1494 = vand.u32 %v311, 4294901760
      %1495 = vmatpush1.msra.mxu0 %v1494
      %1496 = vmatprep.subr.mxu0 0.0
      %v1497 = vand.u32 %v312, 4294901760
      %1498 = vmatpush1.msra.mxu0 %v1497
      %1499 = vmatprep.subr.mxu0 0.0
      %v1500 = vand.u32 %v313, 4294901760
      %1501 = vmatpush1.msra.mxu0 %v1500
      %1502 = vmatprep.subr.mxu0 0.0
      %v1503 = vand.u32 %v314, 4294901760
      %1504 = vmatpush1.msra.mxu0 %v1503
      %1505 = vmatprep.subr.mxu0 0.0
      %v1506 = vand.u32 %v315, 4294901760
      %1507 = vmatpush1.msra.mxu0 %v1506
      %1508 = vmatprep.subr.mxu0 0.0
      %v1509 = vand.u32 %v316, 4294901760
      %1510 = vmatpush1.msra.mxu0 %v1509
      %1511 = vmatprep.subr.mxu0 0.0
      %v1512 = vand.u32 %v317, 4294901760
      %1513 = vmatpush1.msra.mxu0 %v1512
      %1514 = vmatprep.subr.mxu0 0.0
      %v1515 = vand.u32 %v318, 4294901760
      %1516 = vmatpush1.msra.mxu0 %v1515
      %1517 = vmatprep.subr.mxu0 0.0
      %1518 = vmatpush1.msra.mxu0 0.0
      %1519 = vmatprep.subr.mxu0 0.0
      %1520 = vmatpush1.msra.mxu0 0.0
      %1521 = vmatprep.subr.mxu0 0.0
      %1522 = vmatpush1.msra.mxu0 0.0
      %1523 = vmatprep.subr.mxu0 0.0
      %1524 = vmatpush1.msra.mxu0 0.0
      %1525 = vmatprep.subr.mxu0 0.0
      %1526 = vmatpush1.msra.mxu0 0.0
      %1527 = vmatprep.subr.mxu0 0.0
      %1528 = vmatpush1.msra.mxu0 0.0
      %1529 = vmatprep.subr.mxu0 0.0
      %1530 = vmatpush1.msra.mxu0 0.0
      %1531 = vmatprep.subr.mxu0 0.0
      %1532 = vmatpush1.msra.mxu0 0.0
      %1533 = vmatprep.subr.mxu0 0.0
      %1534 = vmatpush1.msra.mxu0 0.0
      %1535 = vmatprep.subr.mxu0 0.0
      %1536 = vmatpush1.msra.mxu0 0.0
      %1537 = vmatprep.subr.mxu0 0.0
      %1538 = vmatpush1.msra.mxu0 0.0
      %1539 = vmatprep.subr.mxu0 0.0
      %1540 = vmatpush1.msra.mxu0 0.0
      %1541 = vmatprep.subr.mxu0 0.0
      %1542 = vmatpush1.msra.mxu0 0.0
      %1543 = vmatprep.subr.mxu0 0.0
      %1544 = vmatpush1.msra.mxu0 0.0
      %1545 = vmatprep.subr.mxu0 0.0
      %1546 = vmatpush1.msra.mxu0 0.0
      %1547 = vmatprep.subr.mxu0 0.0
      %1548 = vmatpush1.msra.mxu0 0.0
      %1549 = vmatprep.subr.mxu0 0.0
      %1550 = vmatpush1.msra.mxu0 0.0
      %1551 = vmatprep.subr.mxu0 0.0
      %1552 = vmatpush1.msra.mxu0 0.0
      %1553 = vmatprep.subr.mxu0 0.0
      %1554 = vmatpush1.msra.mxu0 0.0
      %1555 = vmatprep.subr.mxu0 0.0
      %1556 = vmatpush1.msra.mxu0 0.0
      %1557 = vmatprep.subr.mxu0 0.0
      %1558 = vmatpush1.msra.mxu0 0.0
      %1559 = vmatprep.subr.mxu0 0.0
      %1560 = vmatpush1.msra.mxu0 0.0
      %1561 = vmatprep.subr.mxu0 0.0
      %1562 = vmatpush1.msra.mxu0 0.0
      %1563 = vmatprep.subr.mxu0 0.0
      %1564 = vmatpush1.msra.mxu0 0.0
      %1565 = vmatprep.mubr.f32.mxu0 0.0
      %v1566 = vand.u32 %v993, 4294901760
      %1567 = vmatmul.mubr.f32.gmra.mrb[0].mxu0 %v1566
      %v1568 = vpop.f32.mrb[0].mxu0
      %v1569 = vadd.f32 %v1484, %v1568
      %v1570 = vpop.f32.mrb[0].mxu0
      %1571 = vmatprep.mubr.f32.mxu0 0.0
      %v1572 = vand.u32 %v996, 4294901760
      %1573 = vmatmul.mubr.f32.gmra.mrb[0].mxu0 %v1572
      %v1574 = vpop.f32.mrb[0].mxu0
      %v1575 = vadd.f32 %v1490, %v1574
      %v1576 = vpop.f32.mrb[0].mxu0
      %1577 = vdwg.mxu0
      %vm1578 = vcmask 261120
      %v1580 = vsel %vm1578, %v337, 0
      %v1583 = vsel %vm1578, %v338, 0
      %1585 = vmatprep.subr.mxu0 0.0
      %v1586 = vand.u32 %v299, 4294901760
      %1587 = vmatpush1.msra.mxu0 %v1586
      %1588 = vmatprep.subr.mxu0 0.0
      %v1589 = vand.u32 %v300, 4294901760
      %1590 = vmatpush1.msra.mxu0 %v1589
      %1591 = vmatprep.subr.mxu0 0.0
      %v1592 = vand.u32 %v301, 4294901760
      %1593 = vmatpush1.msra.mxu0 %v1592
      %1594 = vmatprep.subr.mxu0 0.0
      %v1595 = vand.u32 %v302, 4294901760
      %1596 = vmatpush1.msra.mxu0 %v1595
      %1597 = vmatprep.subr.mxu0 0.0
      %1598 = vmatpush1.msra.mxu0 0.0
      %1599 = vmatprep.subr.mxu0 0.0
      %1600 = vmatpush1.msra.mxu0 0.0
      %1601 = vmatprep.subr.mxu0 0.0
      %1602 = vmatpush1.msra.mxu0 0.0
      %1603 = vmatprep.subr.mxu0 0.0
      %1604 = vmatpush1.msra.mxu0 0.0
      %1605 = vmatprep.subr.mxu0 0.0
      %1606 = vmatpush1.msra.mxu0 0.0
      %1607 = vmatprep.subr.mxu0 0.0
      %1608 = vmatpush1.msra.mxu0 0.0
      %1609 = vmatprep.subr.mxu0 0.0
      %1610 = vmatpush1.msra.mxu0 0.0
      %1611 = vmatprep.subr.mxu0 0.0
      %1612 = vmatpush1.msra.mxu0 0.0
      %1613 = vmatprep.subr.mxu0 0.0
      %1614 = vmatpush1.msra.mxu0 0.0
      %1615 = vmatprep.subr.mxu0 0.0
      %1616 = vmatpush1.msra.mxu0 0.0
      %1617 = vmatprep.subr.mxu0 0.0
      %1618 = vmatpush1.msra.mxu0 0.0
      %1619 = vmatprep.subr.mxu0 0.0
      %1620 = vmatpush1.msra.mxu0 0.0
      %1621 = vmatprep.subr.mxu0 0.0
      %1622 = vmatpush1.msra.mxu0 0.0
      %1623 = vmatprep.subr.mxu0 0.0
      %1624 = vmatpush1.msra.mxu0 0.0
      %1625 = vmatprep.subr.mxu0 0.0
      %1626 = vmatpush1.msra.mxu0 0.0
      %1627 = vmatprep.subr.mxu0 0.0
      %1628 = vmatpush1.msra.mxu0 0.0
      %1629 = vmatprep.subr.mxu0 0.0
      %1630 = vmatpush1.msra.mxu0 0.0
      %1631 = vmatprep.subr.mxu0 0.0
      %1632 = vmatpush1.msra.mxu0 0.0
      %1633 = vmatprep.subr.mxu0 0.0
      %1634 = vmatpush1.msra.mxu0 0.0
      %1635 = vmatprep.subr.mxu0 0.0
      %1636 = vmatpush1.msra.mxu0 0.0
      %1637 = vmatprep.subr.mxu0 0.0
      %1638 = vmatpush1.msra.mxu0 0.0
      %1639 = vmatprep.subr.mxu0 0.0
      %1640 = vmatpush1.msra.mxu0 0.0
      %1641 = vmatprep.subr.mxu0 0.0
      %1642 = vmatpush1.msra.mxu0 0.0
      %1643 = vmatprep.subr.mxu0 0.0
      %1644 = vmatpush1.msra.mxu0 0.0
      %1645 = vmatprep.subr.mxu0 0.0
      %1646 = vmatpush1.msra.mxu0 0.0
      %1647 = vmatprep.subr.mxu0 0.0
      %1648 = vmatpush1.msra.mxu0 0.0
      %1649 = vmatprep.subr.mxu0 0.0
      %1650 = vmatpush1.msra.mxu0 0.0
      %1651 = vmatprep.subr.mxu0 0.0
      %1652 = vmatpush1.msra.mxu0 0.0
      %1653 = vmatprep.mubr.f32.mxu0 0.0
      %v1654 = vand.u32 %v1580, 4294901760
      %v1655 = vsub.f32 %v1580, %v1654
      %v1656 = vand.u32 %v1655, 4294901760
      %v1657 = vsub.f32 %v1655, %v1656
      %v1658 = vand.u32 %v1657, 4294901760
      %1659 = vmatmul.mubr.f32.gmra.mrb[0].mxu0 %v1658
      %v1660 = vpop.f32.mrb[0].mxu0
      %v1661 = vadd.f32 %v1569, %v1660
      %v1662 = vpop.f32.mrb[0].mxu0
      %1663 = vmatprep.mubr.f32.mxu0 0.0
      %v1664 = vand.u32 %v1583, 4294901760
      %v1665 = vsub.f32 %v1583, %v1664
      %v1666 = vand.u32 %v1665, 4294901760
      %v1667 = vsub.f32 %v1665, %v1666
      %v1668 = vand.u32 %v1667, 4294901760
      %1669 = vmatmul.mubr.f32.gmra.mrb[0].mxu0 %v1668
      %v1670 = vpop.f32.mrb[0].mxu0
      %v1671 = vadd.f32 %v1575, %v1670
      %v1672 = vpop.f32.mrb[0].mxu0
      %1673 = vdwg.mxu0
      %1674 = vmatprep.subr.mxu0 0.0
      %v1675 = vand.u32 %v299, 4294901760
      %v1676 = vsub.f32 %v299, %v1675
      %v1677 = vand.u32 %v1676, 4294901760
      %v1678 = vsub.f32 %v1676, %v1677
      %v1679 = vand.u32 %v1678, 4294901760
      %1680 = vmatpush1.msra.mxu0 %v1679
      %1681 = vmatprep.subr.mxu0 0.0
      %v1682 = vand.u32 %v300, 4294901760
      %v1683 = vsub.f32 %v300, %v1682
      %v1684 = vand.u32 %v1683, 4294901760
      %v1685 = vsub.f32 %v1683, %v1684
      %v1686 = vand.u32 %v1685, 4294901760
      %1687 = vmatpush1.msra.mxu0 %v1686
      %1688 = vmatprep.subr.mxu0 0.0
      %v1689 = vand.u32 %v301, 4294901760
      %v1690 = vsub.f32 %v301, %v1689
      %v1691 = vand.u32 %v1690, 4294901760
      %v1692 = vsub.f32 %v1690, %v1691
      %v1693 = vand.u32 %v1692, 4294901760
      %1694 = vmatpush1.msra.mxu0 %v1693
      %1695 = vmatprep.subr.mxu0 0.0
      %v1696 = vand.u32 %v302, 4294901760
      %v1697 = vsub.f32 %v302, %v1696
      %v1698 = vand.u32 %v1697, 4294901760
      %v1699 = vsub.f32 %v1697, %v1698
      %v1700 = vand.u32 %v1699, 4294901760
      %1701 = vmatpush1.msra.mxu0 %v1700
      %1702 = vmatprep.subr.mxu0 0.0
      %1703 = vmatpush1.msra.mxu0 0.0
      %1704 = vmatprep.subr.mxu0 0.0
      %1705 = vmatpush1.msra.mxu0 0.0
      %1706 = vmatprep.subr.mxu0 0.0
      %1707 = vmatpush1.msra.mxu0 0.0
      %1708 = vmatprep.subr.mxu0 0.0
      %1709 = vmatpush1.msra.mxu0 0.0
      %1710 = vmatprep.subr.mxu0 0.0
      %1711 = vmatpush1.msra.mxu0 0.0
      %1712 = vmatprep.subr.mxu0 0.0
      %1713 = vmatpush1.msra.mxu0 0.0
      %1714 = vmatprep.subr.mxu0 0.0
      %1715 = vmatpush1.msra.mxu0 0.0
      %1716 = vmatprep.subr.mxu0 0.0
      %1717 = vmatpush1.msra.mxu0 0.0
      %1718 = vmatprep.subr.mxu0 0.0
      %1719 = vmatpush1.msra.mxu0 0.0
      %1720 = vmatprep.subr.mxu0 0.0
      %1721 = vmatpush1.msra.mxu0 0.0
      %1722 = vmatprep.subr.mxu0 0.0
      %1723 = vmatpush1.msra.mxu0 0.0
      %1724 = vmatprep.subr.mxu0 0.0
      %1725 = vmatpush1.msra.mxu0 0.0
      %1726 = vmatprep.subr.mxu0 0.0
      %1727 = vmatpush1.msra.mxu0 0.0
      %1728 = vmatprep.subr.mxu0 0.0
      %1729 = vmatpush1.msra.mxu0 0.0
      %1730 = vmatprep.subr.mxu0 0.0
      %1731 = vmatpush1.msra.mxu0 0.0
      %1732 = vmatprep.subr.mxu0 0.0
      %1733 = vmatpush1.msra.mxu0 0.0
      %1734 = vmatprep.subr.mxu0 0.0
      %1735 = vmatpush1.msra.mxu0 0.0
      %1736 = vmatprep.subr.mxu0 0.0
      %1737 = vmatpush1.msra.mxu0 0.0
      %1738 = vmatprep.subr.mxu0 0.0
      %1739 = vmatpush1.msra.mxu0 0.0
      %1740 = vmatprep.subr.mxu0 0.0
      %1741 = vmatpush1.msra.mxu0 0.0
      %1742 = vmatprep.subr.mxu0 0.0
      %1743 = vmatpush1.msra.mxu0 0.0
      %1744 = vmatprep.subr.mxu0 0.0
      %1745 = vmatpush1.msra.mxu0 0.0
      %1746 = vmatprep.subr.mxu0 0.0
      %1747 = vmatpush1.msra.mxu0 0.0
      %1748 = vmatprep.subr.mxu0 0.0
      %1749 = vmatpush1.msra.mxu0 0.0
      %1750 = vmatprep.subr.mxu0 0.0
      %1751 = vmatpush1.msra.mxu0 0.0
      %1752 = vmatprep.subr.mxu0 0.0
      %1753 = vmatpush1.msra.mxu0 0.0
      %1754 = vmatprep.subr.mxu0 0.0
      %1755 = vmatpush1.msra.mxu0 0.0
      %1756 = vmatprep.subr.mxu0 0.0
      %1757 = vmatpush1.msra.mxu0 0.0
      %1758 = vmatprep.mubr.f32.mxu0 0.0
      %v1759 = vand.u32 %v1580, 4294901760
      %1760 = vmatmul.mubr.f32.gmra.mrb[0].mxu0 %v1759
      %v1761 = vpop.f32.mrb[0].mxu0
      %v1762 = vadd.f32 %v1661, %v1761
      %v1763 = vpop.f32.mrb[0].mxu0
      %1764 = vmatprep.mubr.f32.mxu0 0.0
      %v1765 = vand.u32 %v1583, 4294901760
      %1766 = vmatmul.mubr.f32.gmra.mrb[0].mxu0 %v1765
      %v1767 = vpop.f32.mrb[0].mxu0
      %v1768 = vadd.f32 %v1671, %v1767
      %v1769 = vpop.f32.mrb[0].mxu0
      %1770 = vdwg.mxu0
      %1771 = vmatprep.subr.mxu0 0.0
      %v1772 = vand.u32 %v299, 4294901760
      %v1773 = vsub.f32 %v299, %v1772
      %1774 = vmatpush1.msra.mxu0 %v1773
      %1775 = vmatprep.subr.mxu0 0.0
      %v1776 = vand.u32 %v300, 4294901760
      %v1777 = vsub.f32 %v300, %v1776
      %1778 = vmatpush1.msra.mxu0 %v1777
      %1779 = vmatprep.subr.mxu0 0.0
      %v1780 = vand.u32 %v301, 4294901760
      %v1781 = vsub.f32 %v301, %v1780
      %1782 = vmatpush1.msra.mxu0 %v1781
      %1783 = vmatprep.subr.mxu0 0.0
      %v1784 = vand.u32 %v302, 4294901760
      %v1785 = vsub.f32 %v302, %v1784
      %1786 = vmatpush1.msra.mxu0 %v1785
      %1787 = vmatprep.subr.mxu0 0.0
      %1788 = vmatpush1.msra.mxu0 0.0
      %1789 = vmatprep.subr.mxu0 0.0
      %1790 = vmatpush1.msra.mxu0 0.0
      %1791 = vmatprep.subr.mxu0 0.0
      %1792 = vmatpush1.msra.mxu0 0.0
      %1793 = vmatprep.subr.mxu0 0.0
      %1794 = vmatpush1.msra.mxu0 0.0
      %1795 = vmatprep.subr.mxu0 0.0
      %1796 = vmatpush1.msra.mxu0 0.0
      %1797 = vmatprep.subr.mxu0 0.0
      %1798 = vmatpush1.msra.mxu0 0.0
      %1799 = vmatprep.subr.mxu0 0.0
      %1800 = vmatpush1.msra.mxu0 0.0
      %1801 = vmatprep.subr.mxu0 0.0
      %1802 = vmatpush1.msra.mxu0 0.0
      %1803 = vmatprep.subr.mxu0 0.0
      %1804 = vmatpush1.msra.mxu0 0.0
      %1805 = vmatprep.subr.mxu0 0.0
      %1806 = vmatpush1.msra.mxu0 0.0
      %1807 = vmatprep.subr.mxu0 0.0
      %1808 = vmatpush1.msra.mxu0 0.0
      %1809 = vmatprep.subr.mxu0 0.0
      %1810 = vmatpush1.msra.mxu0 0.0
      %1811 = vmatprep.subr.mxu0 0.0
      %1812 = vmatpush1.msra.mxu0 0.0
      %1813 = vmatprep.subr.mxu0 0.0
      %1814 = vmatpush1.msra.mxu0 0.0
      %1815 = vmatprep.subr.mxu0 0.0
      %1816 = vmatpush1.msra.mxu0 0.0
      %1817 = vmatprep.subr.mxu0 0.0
      %1818 = vmatpush1.msra.mxu0 0.0
      %1819 = vmatprep.subr.mxu0 0.0
      %1820 = vmatpush1.msra.mxu0 0.0
      %1821 = vmatprep.subr.mxu0 0.0
      %1822 = vmatpush1.msra.mxu0 0.0
      %1823 = vmatprep.subr.mxu0 0.0
      %1824 = vmatpush1.msra.mxu0 0.0
      %1825 = vmatprep.subr.mxu0 0.0
      %1826 = vmatpush1.msra.mxu0 0.0
      %1827 = vmatprep.subr.mxu0 0.0
      %1828 = vmatpush1.msra.mxu0 0.0
      %1829 = vmatprep.subr.mxu0 0.0
      %1830 = vmatpush1.msra.mxu0 0.0
      %1831 = vmatprep.subr.mxu0 0.0
      %1832 = vmatpush1.msra.mxu0 0.0
      %1833 = vmatprep.subr.mxu0 0.0
      %1834 = vmatpush1.msra.mxu0 0.0
      %1835 = vmatprep.subr.mxu0 0.0
      %1836 = vmatpush1.msra.mxu0 0.0
      %1837 = vmatprep.subr.mxu0 0.0
      %1838 = vmatpush1.msra.mxu0 0.0
      %1839 = vmatprep.subr.mxu0 0.0
      %1840 = vmatpush1.msra.mxu0 0.0
      %1841 = vmatprep.subr.mxu0 0.0
      %1842 = vmatpush1.msra.mxu0 0.0
      %1843 = vmatprep.mubr.f32.mxu0 0.0
      %v1844 = vand.u32 %v1580, 4294901760
      %v1845 = vsub.f32 %v1580, %v1844
      %1846 = vmatmul.mubr.f32.gmra.mrb[0].mxu0 %v1845
      %v1847 = vpop.f32.mrb[0].mxu0
      %v1848 = vadd.f32 %v1762, %v1847
      %v1849 = vpop.f32.mrb[0].mxu0
      %1850 = vmatprep.mubr.f32.mxu0 0.0
      %v1851 = vand.u32 %v1583, 4294901760
      %v1852 = vsub.f32 %v1583, %v1851
      %1853 = vmatmul.mubr.f32.gmra.mrb[0].mxu0 %v1852
      %v1854 = vpop.f32.mrb[0].mxu0
      %v1855 = vadd.f32 %v1768, %v1854
      %v1856 = vpop.f32.mrb[0].mxu0
      %1857 = vdwg.mxu0
      %1858 = vmatprep.subr.mxu0 0.0
      %v1859 = vand.u32 %v299, 4294901760
      %1860 = vmatpush1.msra.mxu0 %v1859
      %1861 = vmatprep.subr.mxu0 0.0
      %v1862 = vand.u32 %v300, 4294901760
      %1863 = vmatpush1.msra.mxu0 %v1862
      %1864 = vmatprep.subr.mxu0 0.0
      %v1865 = vand.u32 %v301, 4294901760
      %1866 = vmatpush1.msra.mxu0 %v1865
      %1867 = vmatprep.subr.mxu0 0.0
      %v1868 = vand.u32 %v302, 4294901760
      %1869 = vmatpush1.msra.mxu0 %v1868
      %1870 = vmatprep.subr.mxu0 0.0
      %1871 = vmatpush1.msra.mxu0 0.0
      %1872 = vmatprep.subr.mxu0 0.0
      %1873 = vmatpush1.msra.mxu0 0.0
      %1874 = vmatprep.subr.mxu0 0.0
      %1875 = vmatpush1.msra.mxu0 0.0
      %1876 = vmatprep.subr.mxu0 0.0
      %1877 = vmatpush1.msra.mxu0 0.0
      %1878 = vmatprep.subr.mxu0 0.0
      %1879 = vmatpush1.msra.mxu0 0.0
      %1880 = vmatprep.subr.mxu0 0.0
      %1881 = vmatpush1.msra.mxu0 0.0
      %1882 = vmatprep.subr.mxu0 0.0
      %1883 = vmatpush1.msra.mxu0 0.0
      %1884 = vmatprep.subr.mxu0 0.0
      %1885 = vmatpush1.msra.mxu0 0.0
      %1886 = vmatprep.subr.mxu0 0.0
      %1887 = vmatpush1.msra.mxu0 0.0
      %1888 = vmatprep.subr.mxu0 0.0
      %1889 = vmatpush1.msra.mxu0 0.0
      %1890 = vmatprep.subr.mxu0 0.0
      %1891 = vmatpush1.msra.mxu0 0.0
      %1892 = vmatprep.subr.mxu0 0.0
      %1893 = vmatpush1.msra.mxu0 0.0
      %1894 = vmatprep.subr.mxu0 0.0
      %1895 = vmatpush1.msra.mxu0 0.0
      %1896 = vmatprep.subr.mxu0 0.0
      %1897 = vmatpush1.msra.mxu0 0.0
      %1898 = vmatprep.subr.mxu0 0.0
      %1899 = vmatpush1.msra.mxu0 0.0
      %1900 = vmatprep.subr.mxu0 0.0
      %1901 = vmatpush1.msra.mxu0 0.0
      %1902 = vmatprep.subr.mxu0 0.0
      %1903 = vmatpush1.msra.mxu0 0.0
      %1904 = vmatprep.subr.mxu0 0.0
      %1905 = vmatpush1.msra.mxu0 0.0
      %1906 = vmatprep.subr.mxu0 0.0
      %1907 = vmatpush1.msra.mxu0 0.0
      %1908 = vmatprep.subr.mxu0 0.0
      %1909 = vmatpush1.msra.mxu0 0.0
      %1910 = vmatprep.subr.mxu0 0.0
      %1911 = vmatpush1.msra.mxu0 0.0
      %1912 = vmatprep.subr.mxu0 0.0
      %1913 = vmatpush1.msra.mxu0 0.0
      %1914 = vmatprep.subr.mxu0 0.0
      %1915 = vmatpush1.msra.mxu0 0.0
      %1916 = vmatprep.subr.mxu0 0.0
      %1917 = vmatpush1.msra.mxu0 0.0
      %1918 = vmatprep.subr.mxu0 0.0
      %1919 = vmatpush1.msra.mxu0 0.0
      %1920 = vmatprep.subr.mxu0 0.0
      %1921 = vmatpush1.msra.mxu0 0.0
      %1922 = vmatprep.subr.mxu0 0.0
      %1923 = vmatpush1.msra.mxu0 0.0
      %1924 = vmatprep.subr.mxu0 0.0
      %1925 = vmatpush1.msra.mxu0 0.0
      %1926 = vmatprep.mubr.f32.mxu0 0.0
      %v1927 = vand.u32 %v1580, 4294901760
      %v1928 = vsub.f32 %v1580, %v1927
      %v1929 = vand.u32 %v1928, 4294901760
      %1930 = vmatmul.mubr.f32.gmra.mrb[0].mxu0 %v1929
      %v1931 = vpop.f32.mrb[0].mxu0
      %v1932 = vadd.f32 %v1848, %v1931
      %v1933 = vpop.f32.mrb[0].mxu0
      %1934 = vmatprep.mubr.f32.mxu0 0.0
      %v1935 = vand.u32 %v1583, 4294901760
      %v1936 = vsub.f32 %v1583, %v1935
      %v1937 = vand.u32 %v1936, 4294901760
      %1938 = vmatmul.mubr.f32.gmra.mrb[0].mxu0 %v1937
      %v1939 = vpop.f32.mrb[0].mxu0
      %v1940 = vadd.f32 %v1855, %v1939
      %v1941 = vpop.f32.mrb[0].mxu0
      %1942 = vdwg.mxu0
      %1943 = vmatprep.subr.mxu0 0.0
      %v1944 = vand.u32 %v299, 4294901760
      %v1945 = vsub.f32 %v299, %v1944
      %v1946 = vand.u32 %v1945, 4294901760
      %1947 = vmatpush1.msra.mxu0 %v1946
      %1948 = vmatprep.subr.mxu0 0.0
      %v1949 = vand.u32 %v300, 4294901760
      %v1950 = vsub.f32 %v300, %v1949
      %v1951 = vand.u32 %v1950, 4294901760
      %1952 = vmatpush1.msra.mxu0 %v1951
      %1953 = vmatprep.subr.mxu0 0.0
      %v1954 = vand.u32 %v301, 4294901760
      %v1955 = vsub.f32 %v301, %v1954
      %v1956 = vand.u32 %v1955, 4294901760
      %1957 = vmatpush1.msra.mxu0 %v1956
      %1958 = vmatprep.subr.mxu0 0.0
      %v1959 = vand.u32 %v302, 4294901760
      %v1960 = vsub.f32 %v302, %v1959
      %v1961 = vand.u32 %v1960, 4294901760
      %1962 = vmatpush1.msra.mxu0 %v1961
      %1963 = vmatprep.subr.mxu0 0.0
      %1964 = vmatpush1.msra.mxu0 0.0
      %1965 = vmatprep.subr.mxu0 0.0
      %1966 = vmatpush1.msra.mxu0 0.0
      %1967 = vmatprep.subr.mxu0 0.0
      %1968 = vmatpush1.msra.mxu0 0.0
      %1969 = vmatprep.subr.mxu0 0.0
      %1970 = vmatpush1.msra.mxu0 0.0
      %1971 = vmatprep.subr.mxu0 0.0
      %1972 = vmatpush1.msra.mxu0 0.0
      %1973 = vmatprep.subr.mxu0 0.0
      %1974 = vmatpush1.msra.mxu0 0.0
      %1975 = vmatprep.subr.mxu0 0.0
      %1976 = vmatpush1.msra.mxu0 0.0
      %1977 = vmatprep.subr.mxu0 0.0
      %1978 = vmatpush1.msra.mxu0 0.0
      %1979 = vmatprep.subr.mxu0 0.0
      %1980 = vmatpush1.msra.mxu0 0.0
      %1981 = vmatprep.subr.mxu0 0.0
      %1982 = vmatpush1.msra.mxu0 0.0
      %1983 = vmatprep.subr.mxu0 0.0
      %1984 = vmatpush1.msra.mxu0 0.0
      %1985 = vmatprep.subr.mxu0 0.0
      %1986 = vmatpush1.msra.mxu0 0.0
      %1987 = vmatprep.subr.mxu0 0.0
      %1988 = vmatpush1.msra.mxu0 0.0
      %1989 = vmatprep.subr.mxu0 0.0
      %1990 = vmatpush1.msra.mxu0 0.0
      %1991 = vmatprep.subr.mxu0 0.0
      %1992 = vmatpush1.msra.mxu0 0.0
      %1993 = vmatprep.subr.mxu0 0.0
      %1994 = vmatpush1.msra.mxu0 0.0
      %1995 = vmatprep.subr.mxu0 0.0
      %1996 = vmatpush1.msra.mxu0 0.0
      %1997 = vmatprep.subr.mxu0 0.0
      %1998 = vmatpush1.msra.mxu0 0.0
      %1999 = vmatprep.subr.mxu0 0.0
      %2000 = vmatpush1.msra.mxu0 0.0
      %2001 = vmatprep.subr.mxu0 0.0
      %2002 = vmatpush1.msra.mxu0 0.0
      %2003 = vmatprep.subr.mxu0 0.0
      %2004 = vmatpush1.msra.mxu0 0.0
      %2005 = vmatprep.subr.mxu0 0.0
      %2006 = vmatpush1.msra.mxu0 0.0
      %2007 = vmatprep.subr.mxu0 0.0
      %2008 = vmatpush1.msra.mxu0 0.0
      %2009 = vmatprep.subr.mxu0 0.0
      %2010 = vmatpush1.msra.mxu0 0.0
      %2011 = vmatprep.subr.mxu0 0.0
      %2012 = vmatpush1.msra.mxu0 0.0
      %2013 = vmatprep.subr.mxu0 0.0
      %2014 = vmatpush1.msra.mxu0 0.0
      %2015 = vmatprep.subr.mxu0 0.0
      %2016 = vmatpush1.msra.mxu0 0.0
      %2017 = vmatprep.subr.mxu0 0.0
      %2018 = vmatpush1.msra.mxu0 0.0
      %2019 = vmatprep.mubr.f32.mxu0 0.0
      %v2020 = vand.u32 %v1580, 4294901760
      %2021 = vmatmul.mubr.f32.gmra.mrb[0].mxu0 %v2020
      %v2022 = vpop.f32.mrb[0].mxu0
      %v2023 = vadd.f32 %v1932, %v2022
      %v2024 = vpop.f32.mrb[0].mxu0
      %2025 = vmatprep.mubr.f32.mxu0 0.0
      %v2026 = vand.u32 %v1583, 4294901760
      %2027 = vmatmul.mubr.f32.gmra.mrb[0].mxu0 %v2026
      %v2028 = vpop.f32.mrb[0].mxu0
      %v2029 = vadd.f32 %v1940, %v2028
      %v2030 = vpop.f32.mrb[0].mxu0
      %2031 = vdwg.mxu0
      %2032 = vmatprep.subr.mxu0 0.0
      %v2033 = vand.u32 %v299, 4294901760
      %2034 = vmatpush1.msra.mxu0 %v2033
      %2035 = vmatprep.subr.mxu0 0.0
      %v2036 = vand.u32 %v300, 4294901760
      %2037 = vmatpush1.msra.mxu0 %v2036
      %2038 = vmatprep.subr.mxu0 0.0
      %v2039 = vand.u32 %v301, 4294901760
      %2040 = vmatpush1.msra.mxu0 %v2039
      %2041 = vmatprep.subr.mxu0 0.0
      %v2042 = vand.u32 %v302, 4294901760
      %2043 = vmatpush1.msra.mxu0 %v2042
      %2044 = vmatprep.subr.mxu0 0.0
      %2045 = vmatpush1.msra.mxu0 0.0
      %2046 = vmatprep.subr.mxu0 0.0
      %2047 = vmatpush1.msra.mxu0 0.0
      %2048 = vmatprep.subr.mxu0 0.0
      %2049 = vmatpush1.msra.mxu0 0.0
      %2050 = vmatprep.subr.mxu0 0.0
      %2051 = vmatpush1.msra.mxu0 0.0
      %2052 = vmatprep.subr.mxu0 0.0
      %2053 = vmatpush1.msra.mxu0 0.0
      %2054 = vmatprep.subr.mxu0 0.0
      %2055 = vmatpush1.msra.mxu0 0.0
      %2056 = vmatprep.subr.mxu0 0.0
      %2057 = vmatpush1.msra.mxu0 0.0
      %2058 = vmatprep.subr.mxu0 0.0
      %2059 = vmatpush1.msra.mxu0 0.0
      %2060 = vmatprep.subr.mxu0 0.0
      %2061 = vmatpush1.msra.mxu0 0.0
      %2062 = vmatprep.subr.mxu0 0.0
      %2063 = vmatpush1.msra.mxu0 0.0
      %2064 = vmatprep.subr.mxu0 0.0
      %2065 = vmatpush1.msra.mxu0 0.0
      %2066 = vmatprep.subr.mxu0 0.0
      %2067 = vmatpush1.msra.mxu0 0.0
      %2068 = vmatprep.subr.mxu0 0.0
      %2069 = vmatpush1.msra.mxu0 0.0
      %2070 = vmatprep.subr.mxu0 0.0
      %2071 = vmatpush1.msra.mxu0 0.0
      %2072 = vmatprep.subr.mxu0 0.0
      %2073 = vmatpush1.msra.mxu0 0.0
      %2074 = vmatprep.subr.mxu0 0.0
      %2075 = vmatpush1.msra.mxu0 0.0
      %2076 = vmatprep.subr.mxu0 0.0
      %2077 = vmatpush1.msra.mxu0 0.0
      %2078 = vmatprep.subr.mxu0 0.0
      %2079 = vmatpush1.msra.mxu0 0.0
      %2080 = vmatprep.subr.mxu0 0.0
      %2081 = vmatpush1.msra.mxu0 0.0
      %2082 = vmatprep.subr.mxu0 0.0
      %2083 = vmatpush1.msra.mxu0 0.0
      %2084 = vmatprep.subr.mxu0 0.0
      %2085 = vmatpush1.msra.mxu0 0.0
      %2086 = vmatprep.subr.mxu0 0.0
      %2087 = vmatpush1.msra.mxu0 0.0
      %2088 = vmatprep.subr.mxu0 0.0
      %2089 = vmatpush1.msra.mxu0 0.0
      %2090 = vmatprep.subr.mxu0 0.0
      %2091 = vmatpush1.msra.mxu0 0.0
      %2092 = vmatprep.subr.mxu0 0.0
      %2093 = vmatpush1.msra.mxu0 0.0
      %2094 = vmatprep.subr.mxu0 0.0
      %2095 = vmatpush1.msra.mxu0 0.0
      %2096 = vmatprep.subr.mxu0 0.0
      %2097 = vmatpush1.msra.mxu0 0.0
      %2098 = vmatprep.subr.mxu0 0.0
      %2099 = vmatpush1.msra.mxu0 0.0
      %2100 = vmatprep.mubr.f32.mxu0 0.0
      %v2101 = vand.u32 %v1580, 4294901760
      %2102 = vmatmul.mubr.f32.gmra.mrb[0].mxu0 %v2101
      %v2103 = vpop.f32.mrb[0].mxu0
      %v2104 = vadd.f32 %v2023, %v2103
      %v2105 = vpop.f32.mrb[0].mxu0
      %2106 = vmatprep.mubr.f32.mxu0 0.0
      %v2107 = vand.u32 %v1583, 4294901760
      %2108 = vmatmul.mubr.f32.gmra.mrb[0].mxu0 %v2107
      %v2109 = vpop.f32.mrb[0].mxu0
      %v2110 = vadd.f32 %v2029, %v2109
      %v2111 = vpop.f32.mrb[0].mxu0
      %2112 = vdwg.mxu0
      %v2113 = vmul.f32 %v929, %v2104
      %v2114 = vmul.f32 %v935, %v2110
      %vm2115 = vcmask 326656
      %v2116 = vsel %vm2115, %v2113, 0.0
      %2117 = vadd.xlane.f32.xlu0 %v2116
      %v2118 = vpop.xlane.xlu0 %2117
      %v2119 = vsel %vm2115, %v2114, 0.0
      %2120 = vadd.xlane.f32.xlu0 %v2119
      %v2121 = vpop.xlane.xlu0 %2120
      %v2122 = vxor.u32 %v2118, 2147483648
      %v2123 = vxor.u32 %v2121, 2147483648
      %v2124 = vmul.f32 %v2122, 1.442695
      %v2125 = vpow.pop %v2124
      %v2126 = vmul.f32 %v2123, 1.442695
      %v2127 = vpow.pop %v2126
      %v2128 = vadd.f32 %v2125, 1.0
      %v2129 = vadd.f32 %v2127, 1.0
      %v2130 = vrcp.pop %v2128
      %v2131 = vmul.f32 1.0, %v2130
      %v2132 = vrcp.pop %v2129
      %v2133 = vmul.f32 1.0, %v2132
      %vm2134 = vcmask 7168
      %2135 = vst.msk [vmem:[%s297] sm:$0xff] %vm2134, %v2131
      %2136 = vst.msk [vmem:[%s297 + $0x8] sm:$0xff] %vm2134, %v2133
      %s2137 = smul.u32 2, %s17
      %p2138 = scmp.lt.s32.totalorder %s2137, 5
      %s2139 = scalar_select %p2138, %s2137, 5
      %s2140 = smul.addr %s2139, 8
      %s2141 = scalar_lea.vmem %s6, %s2140
      // Predicated region
      $region45: #{personalized_embedding_forward.1} parent=43 // pred_check
        %p2142 = pneg %p176
      $region46: #{personalized_embedding_forward.1} parent=43 // pred_check_branch
        %2144 = sbr.rel (%p2142) target = $region48
      $region47: #{personalized_embedding_forward.1} parent=43 // pred_region
        %s2145 = smul.u32 2, %s17
      $region48: #{personalized_embedding_forward.1} parent=43 // pred_fallthru
        _
    $region44: #{personalized_embedding_forward.1} parent=5 // pred_fallthru
      _
    %p2146 = scmp.le.s32.totalorder 2, %s12
    // Predicated region
    $region49: #{personalized_embedding_forward.1} parent=5 // pred_check
      %p2147 = pneg %p2146
    $region50: #{personalized_embedding_forward.1} parent=5 // pred_check_branch
      %2149 = sbr.rel (%p2147) target = $region52
    $region51: #{personalized_embedding_forward.1} parent=5 // pred_region
      %s2150 = ssub.s32 %s12, 2
      // Predicated region
      $region53: #{personalized_embedding_forward.1} parent=51 // pred_check
        %p2151 = pneg %p182
      $region54: #{personalized_embedding_forward.1} parent=51 // pred_check_branch
        %2153 = sbr.rel (%p2151) target = $region56
      $region55: #{personalized_embedding_forward.1} parent=51 // pred_region
        %s2154 = smul.u32 2, %s18
        %p2155 = scmp.lt.s32.totalorder %s2154, 5
        %s2156 = scalar_select %p2155, %s2154, 5
        %s2157 = smul.addr %s2156, 8
        %s2158 = scalar_lea.vmem %s6, %s2157
      $region56: #{personalized_embedding_forward.1} parent=51 // pred_fallthru
        _
    $region52: #{personalized_embedding_forward.1} parent=5 // pred_fallthru
      _
  $region6: #{personalized_embedding_forward.1} parent=0 // loop_footer
    %s16 = sadd.s32 1, %s12
  $region7: #{personalized_embedding_forward.1} parent=0 // loop_footer_branch
    %11 = sbr.rel target = $region3
  $region8: #{personalized_embedding_forward.1} parent=0 // loop_exit
    _

</llo_original>
